<compile_context>
chip_gen: v6e
topology: v6e:2x2x1
jax: 0.10.0
libtpu: 0.0.40
codegen_flags: <defaults>
</compile_context>

<pallas_src>
import functools

import jax
import jax.numpy as jnp
from jax.experimental import pallas as pl
from jax.experimental.pallas import tpu as pltpu

# ---- module hyper-parameters (PyTorch defaults) ----
NDIM = 2
LAYERS = 8
WIDTH = 15
AUX_DIM = 1
OUT_CHANNELS = 1
WEIGHTS_SCALE = 0.1
BN_EPS = 1e-5
LEAKY_SLOPE = 0.01                 # nn.LeakyReLU default

IN_DIM = NDIM + AUX_DIM            # 3
FP = 16                            # feature rows, padded (>= WIDTH, multiple of 8 for f32)
MAX_TILE_N = 16 * 1024             # pixels per grid step: 16 x 16384 x 4B = 1 MiB blocks
VMEM_LIMIT_BYTES = 32 * 1024 * 1024


# ----------------------------------------------------------------------------
# kernels
# ----------------------------------------------------------------------------
def _bn_stats_update(z, t, sum_acc, sq_acc, scale_ref, shift_ref, *, n_valid, tile_n):
    """Accumulate masked per-feature sum / sum-of-squares of z across the N-tile
    grid; at the last tile emit BatchNorm as an affine (scale, shift) so the next
    pass computes zn = z*scale + shift == (z - mean) * rsqrt(var + eps)."""
    @pl.when(t == 0)
    def _():
        sum_acc[...] = jnp.zeros_like(sum_acc)
        sq_acc[...] = jnp.zeros_like(sq_acc)

    lane = jax.lax.broadcasted_iota(jnp.int32, (1, tile_n), 1)
    valid = (t * tile_n + lane) < n_valid          # mask padded tail columns
    zm = jnp.where(valid, z, 0.0)
    sum_acc[...] += jnp.sum(zm, axis=1, keepdims=True)
    sq_acc[...] += jnp.sum(zm * zm, axis=1, keepdims=True)

    @pl.when(t == pl.num_programs(0) - 1)
    def _():
        inv_n = 1.0 / float(n_valid)
        mean = sum_acc[...] * inv_n
        var = jnp.maximum(sq_acc[...] * inv_n - mean * mean, 0.0)
        scale = jax.lax.rsqrt(var + BN_EPS)
        scale_ref[...] = scale
        shift_ref[...] = -mean * scale


def _first_layer_kernel(x_ref, w_ref, z_ref, scale_ref, shift_ref,
                        sum_acc, sq_acc, *, n_valid, tile_n):
    """z0 = W0 @ x for one N-tile.  x has only IN_DIM=3 real feature rows, so the
    'matmul' is three VPU broadcast multiply-adds.  Accumulates BN stats of z0."""
    t = pl.program_id(0)
    z = w_ref[:, 0:1] * x_ref[0:1, :]
    for k in range(1, IN_DIM):
        z = z + w_ref[:, k:k + 1] * x_ref[k:k + 1, :]
    z_ref[...] = z
    _bn_stats_update(z, t, sum_acc, sq_acc, scale_ref, shift_ref,
                     n_valid=n_valid, tile_n=tile_n)


def _hidden_layer_kernel(z_in_ref, scale_in_ref, shift_in_ref, w_ref,
                         z_ref, scale_ref, shift_ref, sum_acc, sq_acc,
                         *, n_valid, tile_n):
    """BatchNorm (previous layer's stats) -> LeakyReLU -> Linear for one N-tile,
    plus BN stat accumulation for the layer just computed."""
    t = pl.program_id(0)
    zn = z_in_ref[...] * scale_in_ref[...] + shift_in_ref[...]
    h = jnp.where(zn >= 0.0, zn, LEAKY_SLOPE * zn)
    z = jnp.dot(w_ref[...], h, preferred_element_type=jnp.float32)
    z_ref[...] = z
    _bn_stats_update(z, t, sum_acc, sq_acc, scale_ref, shift_ref,
                     n_valid=n_valid, tile_n=tile_n)


def _final_layer_kernel(z_in_ref, scale_in_ref, shift_in_ref, w_ref, y_ref):
    """BatchNorm -> LeakyReLU -> final Linear -> Tanh; lane-dense (1, TILE_N) out."""
    zn = z_in_ref[...] * scale_in_ref[...] + shift_in_ref[...]
    h = jnp.where(zn >= 0.0, zn, LEAKY_SLOPE * zn)
    z = jnp.dot(w_ref[...], h, preferred_element_type=jnp.float32)
    y_ref[...] = jnp.tanh(z[0:OUT_CHANNELS, :])


# ----------------------------------------------------------------------------
# pallas_call builders (one call per layer)
# ----------------------------------------------------------------------------
def _stat_layer_outputs(tile_n, nt):
    out_specs = (pl.BlockSpec((FP, tile_n), lambda t: (0, t)),   # z (per-tile)
                 pl.BlockSpec((FP, 1), lambda t: (0, 0)),        # scale (resident)
                 pl.BlockSpec((FP, 1), lambda t: (0, 0)))        # shift (resident)
    out_shape = (jax.ShapeDtypeStruct((FP, nt * tile_n), jnp.float32),
                 jax.ShapeDtypeStruct((FP, 1), jnp.float32),
                 jax.ShapeDtypeStruct((FP, 1), jnp.float32))
    return out_specs, out_shape


def _first_layer_call(xin, w0, *, n_valid, tile_n, nt):
    out_specs, out_shape = _stat_layer_outputs(tile_n, nt)
    kern = functools.partial(_first_layer_kernel, n_valid=n_valid, tile_n=tile_n)
    return pl.pallas_call(
        kern,
        out_shape=out_shape,
        grid_spec=pltpu.PrefetchScalarGridSpec(
            num_scalar_prefetch=0,
            grid=(nt,),
            in_specs=[
                pl.BlockSpec((IN_DIM, tile_n), lambda t: (0, t)),   # compact input rows
                pl.BlockSpec((FP, FP), lambda t: (0, 0)),           # resident weights
            ],
            out_specs=out_specs,
            scratch_shapes=[pltpu.VMEM((FP, 1), jnp.float32),
                            pltpu.VMEM((FP, 1), jnp.float32)]),
        compiler_params=pltpu.CompilerParams(
            dimension_semantics=("arbitrary",),    # cross-tile stat accumulator
            vmem_limit_bytes=VMEM_LIMIT_BYTES),
    )(xin, w0)


def _hidden_layer_call(z, scale, shift, w, *, n_valid, tile_n, nt):
    out_specs, out_shape = _stat_layer_outputs(tile_n, nt)
    kern = functools.partial(_hidden_layer_kernel, n_valid=n_valid, tile_n=tile_n)
    return pl.pallas_call(
        kern,
        out_shape=out_shape,
        grid_spec=pltpu.PrefetchScalarGridSpec(
            num_scalar_prefetch=0,
            grid=(nt,),
            in_specs=[
                pl.BlockSpec((FP, tile_n), lambda t: (0, t)),       # z from previous layer
                pl.BlockSpec((FP, 1), lambda t: (0, 0)),            # scale (resident)
                pl.BlockSpec((FP, 1), lambda t: (0, 0)),            # shift (resident)
                pl.BlockSpec((FP, FP), lambda t: (0, 0)),           # resident weights
            ],
            out_specs=out_specs,
            scratch_shapes=[pltpu.VMEM((FP, 1), jnp.float32),
                            pltpu.VMEM((FP, 1), jnp.float32)]),
        compiler_params=pltpu.CompilerParams(
            dimension_semantics=("arbitrary",),
            vmem_limit_bytes=VMEM_LIMIT_BYTES),
    )(z, scale, shift, w)


def _final_layer_call(z, scale, shift, w, *, tile_n, nt):
    return pl.pallas_call(
        _final_layer_kernel,
        out_shape=jax.ShapeDtypeStruct((OUT_CHANNELS, nt * tile_n), jnp.float32),
        grid_spec=pltpu.PrefetchScalarGridSpec(
            num_scalar_prefetch=0,
            grid=(nt,),
            in_specs=[
                pl.BlockSpec((FP, tile_n), lambda t: (0, t)),
                pl.BlockSpec((FP, 1), lambda t: (0, 0)),
                pl.BlockSpec((FP, 1), lambda t: (0, 0)),
                pl.BlockSpec((FP, FP), lambda t: (0, 0)),
            ],
            out_specs=pl.BlockSpec((OUT_CHANNELS, tile_n), lambda t: (0, t))),
        compiler_params=pltpu.CompilerParams(
            dimension_semantics=("parallel",),     # no cross-tile state: megacore OK
            vmem_limit_bytes=VMEM_LIMIT_BYTES),
    )(z, scale, shift, w)


# ----------------------------------------------------------------------------
# wrapper
# ----------------------------------------------------------------------------
@functools.partial(jax.jit, static_argnums=(2,))
def cppn_generate(aux, w_stack, out_shape):
    """aux: (n, AUX_DIM) f32; w_stack: (LAYERS, FP, FP) f32 in PyTorch (out, in)
    layout zero-padded to 16x16.  Returns (n, OUT_CHANNELS, H, W) images (NCHW)."""
    n, aux_dim = aux.shape
    assert aux_dim == AUX_DIM
    H, W = out_shape
    N = n * H * W
    tile_n = min(MAX_TILE_N, ((N + 127) // 128) * 128)
    nt = (N + tile_n - 1) // tile_n
    n_pad = nt * tile_n

    # compact (IN_DIM, N) input rows: [h coord, w coord, aux], pixels on lanes.
    hs = jnp.linspace(-1.0, 1.0, H, dtype=jnp.float32)
    ws = jnp.linspace(-1.0, 1.0, W, dtype=jnp.float32)
    ch, cw = jnp.meshgrid(hs, ws, indexing="ij")              # torch.meshgrid 'ij'
    coord = jnp.stack([ch, cw], axis=0).reshape(NDIM, H * W)
    coord = jnp.broadcast_to(coord[:, None, :], (NDIM, n, H * W)).reshape(NDIM, N)
    aux_r = jnp.broadcast_to(aux.T[:, :, None], (AUX_DIM, n, H * W)).reshape(AUX_DIM, N)
    xin = jnp.concatenate([coord, aux_r], axis=0)             # (3, N)
    xin = jnp.pad(xin, ((0, 0), (0, n_pad - N)))

    z, scale, shift = _first_layer_call(xin, w_stack[0],
                                        n_valid=N, tile_n=tile_n, nt=nt)
    for i in range(1, LAYERS - 1):
        z, scale, shift = _hidden_layer_call(z, scale, shift, w_stack[i],
                                             n_valid=N, tile_n=tile_n, nt=nt)
    y = _final_layer_call(z, scale, shift, w_stack[LAYERS - 1],
                          tile_n=tile_n, nt=nt)               # (1, n_pad)

    y = y[0, :N].reshape(n, H, W)
    return y[:, None, :, :]                                   # (n, 1, H, W)


def make_weights(key):
    """weights_init: every Linear ~ N(0, weights_scale), no bias; PyTorch
    (out_features, in_features) layout, zero-padded into (LAYERS, FP, FP)."""
    dims = [IN_DIM] + [WIDTH] * (LAYERS - 1) + [OUT_CHANNELS]
    w_stack = jnp.zeros((LAYERS, FP, FP), jnp.float32)
    keys = jax.random.split(key, LAYERS)
    for i in range(LAYERS):
        fin, fout = dims[i], dims[i + 1]
        w = jax.random.normal(keys[i], (fout, fin), jnp.float32) * WEIGHTS_SCALE
        w_stack = w_stack.at[i, :fout, :fin].set(w)
    return w_stack


def _reference(aux, w_stack, out_shape):
    """Pure-JAX (strict f32) mirror of CPPNGenerator.forward with default config."""
    n = aux.shape[0]
    H, W = out_shape
    hs = jnp.linspace(-1.0, 1.0, H, dtype=jnp.float32)
    ws = jnp.linspace(-1.0, 1.0, W, dtype=jnp.float32)
    ch, cw = jnp.meshgrid(hs, ws, indexing="ij")
    fixed = jnp.broadcast_to(jnp.stack([ch, cw], -1)[None], (n, H, W, NDIM))
    aux_in = jnp.broadcast_to(aux[:, None, None, :], (n, H, W, AUX_DIM))
    x = jnp.concatenate([fixed, aux_in], -1).reshape(-1, IN_DIM)
    dims = [IN_DIM] + [WIDTH] * (LAYERS - 1) + [OUT_CHANNELS]
    h = x
    hi = jax.lax.Precision.HIGHEST
    for i in range(LAYERS - 1):
        wmat = w_stack[i, :dims[i + 1], :dims[i]]             # (out, in)
        z = jnp.dot(h, wmat.T, precision=hi)
        mean = jnp.mean(z, 0, keepdims=True)
        var = jnp.mean((z - mean) ** 2, 0, keepdims=True)
        zn = (z - mean) / jnp.sqrt(var + BN_EPS)
        h = jnp.where(zn >= 0, zn, LEAKY_SLOPE * zn)
    z = jnp.dot(h, w_stack[LAYERS - 1, :OUT_CHANNELS, :dims[LAYERS - 1]].T, precision=hi)
    y = jnp.tanh(z).reshape(n, H, W, OUT_CHANNELS)
    return jnp.transpose(y, (0, 3, 1, 2))


if __name__ == "__main__":
    key = jax.random.PRNGKey(0)
    k_w, k_aux1, k_aux2 = jax.random.split(key, 3)
    w_stack = make_weights(k_w)

    # Tolerance note: the strict-f32 reference may differ from in-kernel MXU f32
    # matmul passes by up to ~1e-2 after 8 normalized layers; structural bugs
    # (wrong stats / masking / layout) produce O(0.1) errors, so this still checks
    # correctness of the kernel structure.
    ATOL = 2e-2
    RTOL = 2e-2

    # 1) small shape (single N-tile): 2 images of 16x16.
    aux = jax.random.normal(k_aux1, (2, AUX_DIM), jnp.float32)
    imgs = jax.block_until_ready(cppn_generate(aux, w_stack, (16, 16)))
    assert imgs.shape == (2, OUT_CHANNELS, 16, 16)
    ref = _reference(aux, w_stack, (16, 16))
    assert jnp.allclose(imgs, ref, atol=ATOL, rtol=RTOL), \
        float(jnp.max(jnp.abs(imgs - ref)))

    # 2) shape exercising the multi-tile, masked cross-tile BatchNorm reduction.
    aux2 = jax.random.normal(k_aux2, (2, AUX_DIM), jnp.float32)
    imgs2 = jax.block_until_ready(cppn_generate(aux2, w_stack, (96, 96)))
    assert imgs2.shape == (2, OUT_CHANNELS, 96, 96)
    ref2 = _reference(aux2, w_stack, (96, 96))
    assert jnp.allclose(imgs2, ref2, atol=ATOL, rtol=RTOL), \
        float(jnp.max(jnp.abs(imgs2 - ref2)))

    print("KERNEL_OK")
</pallas_src>

<mosaic_0001>
module attributes {stable_mosaic.version = 11 : i64} {
  func.func @_final_layer_kernel(%arg0: i32, %arg1: memref<16x512xf32, #tpu.memory_space<vmem>>, %arg2: memref<16x1xf32, #tpu.memory_space<vmem>>, %arg3: memref<16x1xf32, #tpu.memory_space<vmem>>, %arg4: memref<16x16xf32, #tpu.memory_space<vmem>>, %arg5: memref<1x512xf32, #tpu.memory_space<vmem>>) attributes {dimension_semantics = [#tpu.dimension_semantics<parallel>], iteration_bounds = array<i64: 1>, scalar_prefetch = 0 : i64, scratch_operands = 0 : i64, tpu.core_type = #tpu.core_type<tc>, window_params = [{transform_indices = @transform_0, window_bounds = array<i64: 16, 512>}, {pipeline_mode = #tpu.pipeline_mode<synchronous>, transform_indices = @transform_1, window_bounds = array<i64: 16, 1>}, {pipeline_mode = #tpu.pipeline_mode<synchronous>, transform_indices = @transform_2, window_bounds = array<i64: 16, 1>}, {pipeline_mode = #tpu.pipeline_mode<synchronous>, transform_indices = @transform_3, window_bounds = array<i64: 16, 16>}, {transform_indices = @transform_4, window_bounds = array<i64: 1, 512>}]} {
    %c0 = arith.constant 0 : index
    %c0_0 = arith.constant 0 : index
    %0 = vector.load %arg1[%c0, %c0_0] : memref<16x512xf32, #tpu.memory_space<vmem>>, vector<16x512xf32>
    %c0_1 = arith.constant 0 : index
    %c0_2 = arith.constant 0 : index
    %1 = vector.load %arg2[%c0_1, %c0_2] : memref<16x1xf32, #tpu.memory_space<vmem>>, vector<16x1xf32>
    %2 = vector.broadcast %1 : vector<16x1xf32> to vector<16x512xf32>
    %3 = arith.mulf %0, %2 : vector<16x512xf32>
    %c0_3 = arith.constant 0 : index
    %c0_4 = arith.constant 0 : index
    %4 = vector.load %arg3[%c0_3, %c0_4] : memref<16x1xf32, #tpu.memory_space<vmem>>, vector<16x1xf32>
    %5 = vector.broadcast %4 : vector<16x1xf32> to vector<16x512xf32>
    %6 = arith.addf %3, %5 : vector<16x512xf32>
    %cst = arith.constant 0.000000e+00 : f32
    %7 = vector.broadcast %cst : f32 to vector<16x512xf32>
    %8 = arith.cmpf oge, %6, %7 : vector<16x512xf32>
    %cst_5 = arith.constant 0.00999999977 : f32
    %9 = vector.broadcast %cst_5 : f32 to vector<16x512xf32>
    %10 = arith.mulf %9, %6 : vector<16x512xf32>
    %11 = arith.select %8, %6, %10 : vector<16x512xi1>, vector<16x512xf32>
    %c0_6 = arith.constant 0 : index
    %c0_7 = arith.constant 0 : index
    %12 = vector.load %arg4[%c0_6, %c0_7] : memref<16x16xf32, #tpu.memory_space<vmem>>, vector<16x16xf32>
    %cst_8 = arith.constant dense<0.000000e+00> : vector<16x512xf32>
    %13 = tpu.matmul %12, %11, %cst_8 {dimension_numbers = #tpu.dot_dimension_numbers<[1], [0], [0], [1], [0, 0, 1, 1], [], []>} : vector<16x16xf32>, vector<16x512xf32>, vector<16x512xf32> -> vector<16x512xf32>
    %14 = vector.extract_strided_slice %13 {offsets = [0, 0], sizes = [1, 512], strides = [1, 1]} : vector<16x512xf32> to vector<1x512xf32>
    %15 = math.tanh %14 : vector<1x512xf32>
    %c0_9 = arith.constant 0 : index
    %c0_10 = arith.constant 0 : index
    %16 = vector.load %arg5[%c0_9, %c0_10] : memref<1x512xf32, #tpu.memory_space<vmem>>, vector<1x512xf32>
    tpu.vector_store %arg5[%c0_9, %c0_10], %15 {strides = array<i32>} : memref<1x512xf32, #tpu.memory_space<vmem>>, vector<1x512xf32>,
    return
  }
  func.func @transform_0(%arg0: i32) -> (i32, i32) {
    %c0_i32 = arith.constant 0 : i32
    %c0_i32_0 = arith.constant 0 : i32
    return %c0_i32, %arg0 : i32, i32
  }
  func.func @transform_1(%arg0: i32) -> (i32, i32) {
    %c0_i32 = arith.constant 0 : i32
    %c0_i32_0 = arith.constant 0 : i32
    %c0_i32_1 = arith.constant 0 : i32
    return %c0_i32, %c0_i32_0 : i32, i32
  }
  func.func @transform_2(%arg0: i32) -> (i32, i32) {
    %c0_i32 = arith.constant 0 : i32
    %c0_i32_0 = arith.constant 0 : i32
    %c0_i32_1 = arith.constant 0 : i32
    return %c0_i32, %c0_i32_0 : i32, i32
  }
  func.func @transform_3(%arg0: i32) -> (i32, i32) {
    %c0_i32 = arith.constant 0 : i32
    %c0_i32_0 = arith.constant 0 : i32
    %c0_i32_1 = arith.constant 0 : i32
    return %c0_i32, %c0_i32_0 : i32, i32
  }
  func.func @transform_4(%arg0: i32) -> (i32, i32) {
    %c0_i32 = arith.constant 0 : i32
    %c0_i32_0 = arith.constant 0 : i32
    return %c0_i32, %arg0 : i32, i32
  }
}

module attributes {stable_mosaic.version = 11 : i64} {
  func.func @_hidden_layer_kernel(%arg0: i32, %arg1: memref<16x512xf32, #tpu.memory_space<vmem>>, %arg2: memref<16x1xf32, #tpu.memory_space<vmem>>, %arg3: memref<16x1xf32, #tpu.memory_space<vmem>>, %arg4: memref<16x16xf32, #tpu.memory_space<vmem>>, %arg5: memref<16x512xf32, #tpu.memory_space<vmem>>, %arg6: memref<16x1xf32, #tpu.memory_space<vmem>>, %arg7: memref<16x1xf32, #tpu.memory_space<vmem>>, %arg8: memref<16x1xf32, #tpu.memory_space<vmem>>, %arg9: memref<16x1xf32, #tpu.memory_space<vmem>>) attributes {dimension_semantics = [#tpu.dimension_semantics<arbitrary>], iteration_bounds = array<i64: 1>, scalar_prefetch = 0 : i64, scratch_operands = 2 : i64, tpu.core_type = #tpu.core_type<tc>, window_params = [{transform_indices = @transform_0, window_bounds = array<i64: 16, 512>}, {pipeline_mode = #tpu.pipeline_mode<synchronous>, transform_indices = @transform_1, window_bounds = array<i64: 16, 1>}, {pipeline_mode = #tpu.pipeline_mode<synchronous>, transform_indices = @transform_2, window_bounds = array<i64: 16, 1>}, {pipeline_mode = #tpu.pipeline_mode<synchronous>, transform_indices = @transform_3, window_bounds = array<i64: 16, 16>}, {transform_indices = @transform_4, window_bounds = array<i64: 16, 512>}, {pipeline_mode = #tpu.pipeline_mode<synchronous>, transform_indices = @transform_5, window_bounds = array<i64: 16, 1>}, {pipeline_mode = #tpu.pipeline_mode<synchronous>, transform_indices = @transform_6, window_bounds = array<i64: 16, 1>}]} {
    %c0 = arith.constant 0 : index
    %c0_0 = arith.constant 0 : index
    %0 = vector.load %arg1[%c0, %c0_0] : memref<16x512xf32, #tpu.memory_space<vmem>>, vector<16x512xf32>
    %c0_1 = arith.constant 0 : index
    %c0_2 = arith.constant 0 : index
    %1 = vector.load %arg2[%c0_1, %c0_2] : memref<16x1xf32, #tpu.memory_space<vmem>>, vector<16x1xf32>
    %2 = vector.broadcast %1 : vector<16x1xf32> to vector<16x512xf32>
    %3 = arith.mulf %0, %2 : vector<16x512xf32>
    %c0_3 = arith.constant 0 : index
    %c0_4 = arith.constant 0 : index
    %4 = vector.load %arg3[%c0_3, %c0_4] : memref<16x1xf32, #tpu.memory_space<vmem>>, vector<16x1xf32>
    %5 = vector.broadcast %4 : vector<16x1xf32> to vector<16x512xf32>
    %6 = arith.addf %3, %5 : vector<16x512xf32>
    %cst = arith.constant 0.000000e+00 : f32
    %7 = vector.broadcast %cst : f32 to vector<16x512xf32>
    %8 = arith.cmpf oge, %6, %7 : vector<16x512xf32>
    %cst_5 = arith.constant 0.00999999977 : f32
    %9 = vector.broadcast %cst_5 : f32 to vector<16x512xf32>
    %10 = arith.mulf %9, %6 : vector<16x512xf32>
    %11 = arith.select %8, %6, %10 : vector<16x512xi1>, vector<16x512xf32>
    %c0_6 = arith.constant 0 : index
    %c0_7 = arith.constant 0 : index
    %12 = vector.load %arg4[%c0_6, %c0_7] : memref<16x16xf32, #tpu.memory_space<vmem>>, vector<16x16xf32>
    %cst_8 = arith.constant dense<0.000000e+00> : vector<16x512xf32>
    %13 = tpu.matmul %12, %11, %cst_8 {dimension_numbers = #tpu.dot_dimension_numbers<[1], [0], [0], [1], [0, 0, 1, 1], [], []>} : vector<16x16xf32>, vector<16x512xf32>, vector<16x512xf32> -> vector<16x512xf32>
    %c0_9 = arith.constant 0 : index
    %c0_10 = arith.constant 0 : index
    %14 = vector.load %arg5[%c0_9, %c0_10] : memref<16x512xf32, #tpu.memory_space<vmem>>, vector<16x512xf32>
    tpu.vector_store %arg5[%c0_9, %c0_10], %13 {strides = array<i32>} : memref<16x512xf32, #tpu.memory_space<vmem>>, vector<16x512xf32>,
    %c0_i32 = arith.constant 0 : i32
    %15 = arith.cmpi eq, %arg0, %c0_i32 : i32
    %16 = arith.extui %15 : i1 to i32
    %c0_i32_11 = arith.constant 0 : i32
    %17 = arith.cmpi ne, %16, %c0_i32_11 : i32
    scf.if %17 {
      %cst_26 = arith.constant 0.000000e+00 : f32
      %42 = vector.broadcast %cst_26 : f32 to vector<16x1xf32>
      %c0_27 = arith.constant 0 : index
      %c0_28 = arith.constant 0 : index
      %43 = vector.load %arg8[%c0_27, %c0_28] : memref<16x1xf32, #tpu.memory_space<vmem>>, vector<16x1xf32>
      tpu.vector_store %arg8[%c0_27, %c0_28], %42 {strides = array<i32>} : memref<16x1xf32, #tpu.memory_space<vmem>>, vector<16x1xf32>,
      %cst_29 = arith.constant 0.000000e+00 : f32
      %44 = vector.broadcast %cst_29 : f32 to vector<16x1xf32>
      %c0_30 = arith.constant 0 : index
      %c0_31 = arith.constant 0 : index
      %45 = vector.load %arg9[%c0_30, %c0_31] : memref<16x1xf32, #tpu.memory_space<vmem>>, vector<16x1xf32>
      tpu.vector_store %arg9[%c0_30, %c0_31], %44 {strides = array<i32>} : memref<16x1xf32, #tpu.memory_space<vmem>>, vector<16x1xf32>,
    } else {
    }
    %18 = tpu.iota {dimensions = array<i32: 1>} : vector<1x512xi32>
    %c512_i32 = arith.constant 512 : i32
    %19 = arith.muli %arg0, %c512_i32 : i32
    %20 = vector.broadcast %19 : i32 to vector<1x512xi32>
    %21 = arith.addi %20, %18 : vector<1x512xi32>
    %c512_i32_12 = arith.constant 512 : i32
    %22 = vector.broadcast %c512_i32_12 : i32 to vector<1x512xi32>
    %23 = arith.cmpi slt, %21, %22 : vector<1x512xi32>
    %cst_13 = arith.constant 0.000000e+00 : f32
    %24 = vector.shape_cast %23 : vector<1x512xi1> to vector<1x512xi1>
    %25 = vector.broadcast %24 : vector<1x512xi1> to vector<16x512xi1>
    %26 = vector.broadcast %cst_13 : f32 to vector<16x512xf32>
    %27 = arith.select %25, %13, %26 : vector<16x512xi1>, vector<16x512xf32>
    %c0_14 = arith.constant 0 : index
    %c0_15 = arith.constant 0 : index
    %28 = vector.load %arg8[%c0_14, %c0_15] : memref<16x1xf32, #tpu.memory_space<vmem>>, vector<16x1xf32>
    %cst_16 = arith.constant dense<0.000000e+00> : vector<16xf32>
    %29 = vector.multi_reduction <add>, %27, %cst_16 [1] : vector<16x512xf32> to vector<16xf32>
    %30 = vector.shape_cast %29 : vector<16xf32> to vector<16x1xf32>
    %31 = arith.addf %28, %30 : vector<16x1xf32>
    %c0_17 = arith.constant 0 : index
    %c0_18 = arith.constant 0 : index
    %32 = vector.load %arg8[%c0_17, %c0_18] : memref<16x1xf32, #tpu.memory_space<vmem>>, vector<16x1xf32>
    tpu.vector_store %arg8[%c0_17, %c0_18], %31 {strides = array<i32>} : memref<16x1xf32, #tpu.memory_space<vmem>>, vector<16x1xf32>,
    %c0_19 = arith.constant 0 : index
    %c0_20 = arith.constant 0 : index
    %33 = vector.load %arg9[%c0_19, %c0_20] : memref<16x1xf32, #tpu.memory_space<vmem>>, vector<16x1xf32>
    %34 = arith.mulf %27, %27 : vector<16x512xf32>
    %cst_21 = arith.constant dense<0.000000e+00> : vector<16xf32>
    %35 = vector.multi_reduction <add>, %34, %cst_21 [1] : vector<16x512xf32> to vector<16xf32>
    %36 = vector.shape_cast %35 : vector<16xf32> to vector<16x1xf32>
    %37 = arith.addf %33, %36 : vector<16x1xf32>
    %c0_22 = arith.constant 0 : index
    %c0_23 = arith.constant 0 : index
    %38 = vector.load %arg9[%c0_22, %c0_23] : memref<16x1xf32, #tpu.memory_space<vmem>>, vector<16x1xf32>
    tpu.vector_store %arg9[%c0_22, %c0_23], %37 {strides = array<i32>} : memref<16x1xf32, #tpu.memory_space<vmem>>, vector<16x1xf32>,
    %c0_i32_24 = arith.constant 0 : i32
    %39 = arith.cmpi eq, %arg0, %c0_i32_24 : i32
    %40 = arith.extui %39 : i1 to i32
    %c0_i32_25 = arith.constant 0 : i32
    %41 = arith.cmpi ne, %40, %c0_i32_25 : i32
    scf.if %41 {
      %c0_26 = arith.constant 0 : index
      %c0_27 = arith.constant 0 : index
      %42 = vector.load %arg8[%c0_26, %c0_27] : memref<16x1xf32, #tpu.memory_space<vmem>>, vector<16x1xf32>
      %cst_28 = arith.constant 0.001953125 : f32
      %43 = vector.broadcast %cst_28 : f32 to vector<16x1xf32>
      %44 = arith.mulf %42, %43 : vector<16x1xf32>
      %c0_29 = arith.constant 0 : index
      %c0_30 = arith.constant 0 : index
      %45 = vector.load %arg9[%c0_29, %c0_30] : memref<16x1xf32, #tpu.memory_space<vmem>>, vector<16x1xf32>
      %cst_31 = arith.constant 0.001953125 : f32
      %46 = vector.broadcast %cst_31 : f32 to vector<16x1xf32>
      %47 = arith.mulf %45, %46 : vector<16x1xf32>
      %48 = arith.mulf %44, %44 : vector<16x1xf32>
      %49 = arith.subf %47, %48 : vector<16x1xf32>
      %cst_32 = arith.constant 0.000000e+00 : f32
      %50 = vector.broadcast %cst_32 : f32 to vector<16x1xf32>
      %51 = arith.maximumf %49, %50 : vector<16x1xf32>
      %cst_33 = arith.constant 9.99999974E-6 : f32
      %52 = vector.broadcast %cst_33 : f32 to vector<16x1xf32>
      %53 = arith.addf %51, %52 : vector<16x1xf32>
      %54 = math.rsqrt %53 : vector<16x1xf32>
      %c0_34 = arith.constant 0 : index
      %c0_35 = arith.constant 0 : index
      %55 = vector.load %arg6[%c0_34, %c0_35] : memref<16x1xf32, #tpu.memory_space<vmem>>, vector<16x1xf32>
      tpu.vector_store %arg6[%c0_34, %c0_35], %54 {strides = array<i32>} : memref<16x1xf32, #tpu.memory_space<vmem>>, vector<16x1xf32>,
      %cst_36 = arith.constant 0.000000e+00 : f32
      %56 = vector.broadcast %cst_36 : f32 to vector<16x1xf32>
      %57 = arith.subf %56, %44 : vector<16x1xf32>
      %58 = arith.mulf %57, %54 : vector<16x1xf32>
      %c0_37 = arith.constant 0 : index
      %c0_38 = arith.constant 0 : index
      %59 = vector.load %arg7[%c0_37, %c0_38] : memref<16x1xf32, #tpu.memory_space<vmem>>, vector<16x1xf32>
      tpu.vector_store %arg7[%c0_37, %c0_38], %58 {strides = array<i32>} : memref<16x1xf32, #tpu.memory_space<vmem>>, vector<16x1xf32>,
    } else {
    }
    return
  }
  func.func @transform_0(%arg0: i32) -> (i32, i32) {
    %c0_i32 = arith.constant 0 : i32
    %c0_i32_0 = arith.constant 0 : i32
    return %c0_i32, %arg0 : i32, i32
  }
  func.func @transform_1(%arg0: i32) -> (i32, i32) {
    %c0_i32 = arith.constant 0 : i32
    %c0_i32_0 = arith.constant 0 : i32
    %c0_i32_1 = arith.constant 0 : i32
    return %c0_i32, %c0_i32_0 : i32, i32
  }
  func.func @transform_2(%arg0: i32) -> (i32, i32) {
    %c0_i32 = arith.constant 0 : i32
    %c0_i32_0 = arith.constant 0 : i32
    %c0_i32_1 = arith.constant 0 : i32
    return %c0_i32, %c0_i32_0 : i32, i32
  }
  func.func @transform_3(%arg0: i32) -> (i32, i32) {
    %c0_i32 = arith.constant 0 : i32
    %c0_i32_0 = arith.constant 0 : i32
    %c0_i32_1 = arith.constant 0 : i32
    return %c0_i32, %c0_i32_0 : i32, i32
  }
  func.func @transform_4(%arg0: i32) -> (i32, i32) {
    %c0_i32 = arith.constant 0 : i32
    %c0_i32_0 = arith.constant 0 : i32
    return %c0_i32, %arg0 : i32, i32
  }
  func.func @transform_5(%arg0: i32) -> (i32, i32) {
    %c0_i32 = arith.constant 0 : i32
    %c0_i32_0 = arith.constant 0 : i32
    %c0_i32_1 = arith.constant 0 : i32
    return %c0_i32, %c0_i32_0 : i32, i32
  }
  func.func @transform_6(%arg0: i32) -> (i32, i32) {
    %c0_i32 = arith.constant 0 : i32
    %c0_i32_0 = arith.constant 0 : i32
    %c0_i32_1 = arith.constant 0 : i32
    return %c0_i32, %c0_i32_0 : i32, i32
  }
}

module attributes {stable_mosaic.version = 11 : i64} {
  func.func @_first_layer_kernel(%arg0: i32, %arg1: memref<3x512xf32, #tpu.memory_space<vmem>>, %arg2: memref<16x16xf32, #tpu.memory_space<vmem>>, %arg3: memref<16x512xf32, #tpu.memory_space<vmem>>, %arg4: memref<16x1xf32, #tpu.memory_space<vmem>>, %arg5: memref<16x1xf32, #tpu.memory_space<vmem>>, %arg6: memref<16x1xf32, #tpu.memory_space<vmem>>, %arg7: memref<16x1xf32, #tpu.memory_space<vmem>>) attributes {dimension_semantics = [#tpu.dimension_semantics<arbitrary>], iteration_bounds = array<i64: 1>, scalar_prefetch = 0 : i64, scratch_operands = 2 : i64, tpu.core_type = #tpu.core_type<tc>, window_params = [{transform_indices = @transform_0, window_bounds = array<i64: 3, 512>}, {pipeline_mode = #tpu.pipeline_mode<synchronous>, transform_indices = @transform_1, window_bounds = array<i64: 16, 16>}, {transform_indices = @transform_2, window_bounds = array<i64: 16, 512>}, {pipeline_mode = #tpu.pipeline_mode<synchronous>, transform_indices = @transform_3, window_bounds = array<i64: 16, 1>}, {pipeline_mode = #tpu.pipeline_mode<synchronous>, transform_indices = @transform_4, window_bounds = array<i64: 16, 1>}]} {
    %c0 = arith.constant 0 : index
    %c0_0 = arith.constant 0 : index
    %0 = vector.load %arg2[%c0, %c0_0] : memref<16x16xf32, #tpu.memory_space<vmem>>, vector<16x1xf32>
    %c0_1 = arith.constant 0 : index
    %c0_2 = arith.constant 0 : index
    %1 = vector.load %arg1[%c0_1, %c0_2] : memref<3x512xf32, #tpu.memory_space<vmem>>, vector<1x512xf32>
    %2 = vector.broadcast %0 : vector<16x1xf32> to vector<16x512xf32>
    %3 = vector.broadcast %1 : vector<1x512xf32> to vector<16x512xf32>
    %4 = arith.mulf %2, %3 : vector<16x512xf32>
    %c0_3 = arith.constant 0 : index
    %c1 = arith.constant 1 : index
    %5 = vector.load %arg2[%c0_3, %c1] : memref<16x16xf32, #tpu.memory_space<vmem>>, vector<16x1xf32>
    %c1_4 = arith.constant 1 : index
    %c0_5 = arith.constant 0 : index
    %6 = vector.load %arg1[%c1_4, %c0_5] : memref<3x512xf32, #tpu.memory_space<vmem>>, vector<1x512xf32>
    %7 = vector.broadcast %5 : vector<16x1xf32> to vector<16x512xf32>
    %8 = vector.broadcast %6 : vector<1x512xf32> to vector<16x512xf32>
    %9 = arith.mulf %7, %8 : vector<16x512xf32>
    %10 = arith.addf %4, %9 : vector<16x512xf32>
    %c0_6 = arith.constant 0 : index
    %c2 = arith.constant 2 : index
    %11 = vector.load %arg2[%c0_6, %c2] : memref<16x16xf32, #tpu.memory_space<vmem>>, vector<16x1xf32>
    %c2_7 = arith.constant 2 : index
    %c0_8 = arith.constant 0 : index
    %12 = vector.load %arg1[%c2_7, %c0_8] : memref<3x512xf32, #tpu.memory_space<vmem>>, vector<1x512xf32>
    %13 = vector.broadcast %11 : vector<16x1xf32> to vector<16x512xf32>
    %14 = vector.broadcast %12 : vector<1x512xf32> to vector<16x512xf32>
    %15 = arith.mulf %13, %14 : vector<16x512xf32>
    %16 = arith.addf %10, %15 : vector<16x512xf32>
    %c0_9 = arith.constant 0 : index
    %c0_10 = arith.constant 0 : index
    %17 = vector.load %arg3[%c0_9, %c0_10] : memref<16x512xf32, #tpu.memory_space<vmem>>, vector<16x512xf32>
    tpu.vector_store %arg3[%c0_9, %c0_10], %16 {strides = array<i32>} : memref<16x512xf32, #tpu.memory_space<vmem>>, vector<16x512xf32>,
    %c0_i32 = arith.constant 0 : i32
    %18 = arith.cmpi eq, %arg0, %c0_i32 : i32
    %19 = arith.extui %18 : i1 to i32
    %c0_i32_11 = arith.constant 0 : i32
    %20 = arith.cmpi ne, %19, %c0_i32_11 : i32
    scf.if %20 {
      %cst_25 = arith.constant 0.000000e+00 : f32
      %45 = vector.broadcast %cst_25 : f32 to vector<16x1xf32>
      %c0_26 = arith.constant 0 : index
      %c0_27 = arith.constant 0 : index
      %46 = vector.load %arg6[%c0_26, %c0_27] : memref<16x1xf32, #tpu.memory_space<vmem>>, vector<16x1xf32>
      tpu.vector_store %arg6[%c0_26, %c0_27], %45 {strides = array<i32>} : memref<16x1xf32, #tpu.memory_space<vmem>>, vector<16x1xf32>,
      %cst_28 = arith.constant 0.000000e+00 : f32
      %47 = vector.broadcast %cst_28 : f32 to vector<16x1xf32>
      %c0_29 = arith.constant 0 : index
      %c0_30 = arith.constant 0 : index
      %48 = vector.load %arg7[%c0_29, %c0_30] : memref<16x1xf32, #tpu.memory_space<vmem>>, vector<16x1xf32>
      tpu.vector_store %arg7[%c0_29, %c0_30], %47 {strides = array<i32>} : memref<16x1xf32, #tpu.memory_space<vmem>>, vector<16x1xf32>,
    } else {
    }
    %21 = tpu.iota {dimensions = array<i32: 1>} : vector<1x512xi32>
    %c512_i32 = arith.constant 512 : i32
    %22 = arith.muli %arg0, %c512_i32 : i32
    %23 = vector.broadcast %22 : i32 to vector<1x512xi32>
    %24 = arith.addi %23, %21 : vector<1x512xi32>
    %c512_i32_12 = arith.constant 512 : i32
    %25 = vector.broadcast %c512_i32_12 : i32 to vector<1x512xi32>
    %26 = arith.cmpi slt, %24, %25 : vector<1x512xi32>
    %cst = arith.constant 0.000000e+00 : f32
    %27 = vector.shape_cast %26 : vector<1x512xi1> to vector<1x512xi1>
    %28 = vector.broadcast %27 : vector<1x512xi1> to vector<16x512xi1>
    %29 = vector.broadcast %cst : f32 to vector<16x512xf32>
    %30 = arith.select %28, %16, %29 : vector<16x512xi1>, vector<16x512xf32>
    %c0_13 = arith.constant 0 : index
    %c0_14 = arith.constant 0 : index
    %31 = vector.load %arg6[%c0_13, %c0_14] : memref<16x1xf32, #tpu.memory_space<vmem>>, vector<16x1xf32>
    %cst_15 = arith.constant dense<0.000000e+00> : vector<16xf32>
    %32 = vector.multi_reduction <add>, %30, %cst_15 [1] : vector<16x512xf32> to vector<16xf32>
    %33 = vector.shape_cast %32 : vector<16xf32> to vector<16x1xf32>
    %34 = arith.addf %31, %33 : vector<16x1xf32>
    %c0_16 = arith.constant 0 : index
    %c0_17 = arith.constant 0 : index
    %35 = vector.load %arg6[%c0_16, %c0_17] : memref<16x1xf32, #tpu.memory_space<vmem>>, vector<16x1xf32>
    tpu.vector_store %arg6[%c0_16, %c0_17], %34 {strides = array<i32>} : memref<16x1xf32, #tpu.memory_space<vmem>>, vector<16x1xf32>,
    %c0_18 = arith.constant 0 : index
    %c0_19 = arith.constant 0 : index
    %36 = vector.load %arg7[%c0_18, %c0_19] : memref<16x1xf32, #tpu.memory_space<vmem>>, vector<16x1xf32>
    %37 = arith.mulf %30, %30 : vector<16x512xf32>
    %cst_20 = arith.constant dense<0.000000e+00> : vector<16xf32>
    %38 = vector.multi_reduction <add>, %37, %cst_20 [1] : vector<16x512xf32> to vector<16xf32>
    %39 = vector.shape_cast %38 : vector<16xf32> to vector<16x1xf32>
    %40 = arith.addf %36, %39 : vector<16x1xf32>
    %c0_21 = arith.constant 0 : index
    %c0_22 = arith.constant 0 : index
    %41 = vector.load %arg7[%c0_21, %c0_22] : memref<16x1xf32, #tpu.memory_space<vmem>>, vector<16x1xf32>
    tpu.vector_store %arg7[%c0_21, %c0_22], %40 {strides = array<i32>} : memref<16x1xf32, #tpu.memory_space<vmem>>, vector<16x1xf32>,
    %c0_i32_23 = arith.constant 0 : i32
    %42 = arith.cmpi eq, %arg0, %c0_i32_23 : i32
    %43 = arith.extui %42 : i1 to i32
    %c0_i32_24 = arith.constant 0 : i32
    %44 = arith.cmpi ne, %43, %c0_i32_24 : i32
    scf.if %44 {
      %c0_25 = arith.constant 0 : index
      %c0_26 = arith.constant 0 : index
      %45 = vector.load %arg6[%c0_25, %c0_26] : memref<16x1xf32, #tpu.memory_space<vmem>>, vector<16x1xf32>
      %cst_27 = arith.constant 0.001953125 : f32
      %46 = vector.broadcast %cst_27 : f32 to vector<16x1xf32>
      %47 = arith.mulf %45, %46 : vector<16x1xf32>
      %c0_28 = arith.constant 0 : index
      %c0_29 = arith.constant 0 : index
      %48 = vector.load %arg7[%c0_28, %c0_29] : memref<16x1xf32, #tpu.memory_space<vmem>>, vector<16x1xf32>
      %cst_30 = arith.constant 0.001953125 : f32
      %49 = vector.broadcast %cst_30 : f32 to vector<16x1xf32>
      %50 = arith.mulf %48, %49 : vector<16x1xf32>
      %51 = arith.mulf %47, %47 : vector<16x1xf32>
      %52 = arith.subf %50, %51 : vector<16x1xf32>
      %cst_31 = arith.constant 0.000000e+00 : f32
      %53 = vector.broadcast %cst_31 : f32 to vector<16x1xf32>
      %54 = arith.maximumf %52, %53 : vector<16x1xf32>
      %cst_32 = arith.constant 9.99999974E-6 : f32
      %55 = vector.broadcast %cst_32 : f32 to vector<16x1xf32>
      %56 = arith.addf %54, %55 : vector<16x1xf32>
      %57 = math.rsqrt %56 : vector<16x1xf32>
      %c0_33 = arith.constant 0 : index
      %c0_34 = arith.constant 0 : index
      %58 = vector.load %arg4[%c0_33, %c0_34] : memref<16x1xf32, #tpu.memory_space<vmem>>, vector<16x1xf32>
      tpu.vector_store %arg4[%c0_33, %c0_34], %57 {strides = array<i32>} : memref<16x1xf32, #tpu.memory_space<vmem>>, vector<16x1xf32>,
      %cst_35 = arith.constant 0.000000e+00 : f32
      %59 = vector.broadcast %cst_35 : f32 to vector<16x1xf32>
      %60 = arith.subf %59, %47 : vector<16x1xf32>
      %61 = arith.mulf %60, %57 : vector<16x1xf32>
      %c0_36 = arith.constant 0 : index
      %c0_37 = arith.constant 0 : index
      %62 = vector.load %arg5[%c0_36, %c0_37] : memref<16x1xf32, #tpu.memory_space<vmem>>, vector<16x1xf32>
      tpu.vector_store %arg5[%c0_36, %c0_37], %61 {strides = array<i32>} : memref<16x1xf32, #tpu.memory_space<vmem>>, vector<16x1xf32>,
    } else {
    }
    return
  }
  func.func @transform_0(%arg0: i32) -> (i32, i32) {
    %c0_i32 = arith.constant 0 : i32
    %c0_i32_0 = arith.constant 0 : i32
    return %c0_i32, %arg0 : i32, i32
  }
  func.func @transform_1(%arg0: i32) -> (i32, i32) {
    %c0_i32 = arith.constant 0 : i32
    %c0_i32_0 = arith.constant 0 : i32
    %c0_i32_1 = arith.constant 0 : i32
    return %c0_i32, %c0_i32_0 : i32, i32
  }
  func.func @transform_2(%arg0: i32) -> (i32, i32) {
    %c0_i32 = arith.constant 0 : i32
    %c0_i32_0 = arith.constant 0 : i32
    return %c0_i32, %arg0 : i32, i32
  }
  func.func @transform_3(%arg0: i32) -> (i32, i32) {
    %c0_i32 = arith.constant 0 : i32
    %c0_i32_0 = arith.constant 0 : i32
    %c0_i32_1 = arith.constant 0 : i32
    return %c0_i32, %c0_i32_0 : i32, i32
  }
  func.func @transform_4(%arg0: i32) -> (i32, i32) {
    %c0_i32 = arith.constant 0 : i32
    %c0_i32_0 = arith.constant 0 : i32
    %c0_i32_1 = arith.constant 0 : i32
    return %c0_i32, %c0_i32_0 : i32, i32
  }
}

</mosaic_0001>

<llo_original>
// kernel: squeeze.17
$region0: #{squeeze.17}
  %s0 = inlined_call_operand.vmem [shape: f32[512], index: 0, kind: input, shape index: {}]
  %s1 = inlined_call_operand.hbm [shape: f32[2,1,16,16], index: 1, kind: output, shape index: {}]
  $region1: #{squeeze.17} parent=0
    #allocation0 [shape = 'u8[16384]{0}', space=vmem, size = 0x4000, scoped, tag = 'operand span for operand 1']
    #allocation1 [shape = 's32[1]{0}', space=sflag, size = 0x4, scoped, tag = 'scoped memory for squeeze.17']
    #allocation2 [shape = 'u8[4096]{0}', space=vmem, size = 0x1000, scoped, tag = 'scoped mem for input reshape']
    %2 = vsyncpa [#allocation1], 0
    %s4 = sshll.u32 1, 4
    %s5 = ssub.s32 %s4, 1
    %v6 = vld [vmem:[%s0] sm:%s5]
    %7 = vst [vmem:[#allocation2] sm:%s5] %v6
    %v8 = vld [vmem:[#allocation2] sm:$0xf]
    %vm9 = vcmask 130048
    %10 = vst.msk [vmem:[#allocation0] ss:$8 sm:$0xf] %vm9, %v8
    %v11 = vld [vmem:[#allocation2] sm:$0xf]
    %12 = vrot.lane.b32.xlu0 %v11, 112
    %v13 = vpop.permute.xlu0 %12
    %vm14 = vcmask 130048
    %s15 = scalar_lea.vmem [#allocation0], 1
    %16 = vst.msk [vmem:[%s15] ss:$8 sm:$0xf] %vm14, %v13
    %v17 = vld [vmem:[#allocation2] sm:$0xf]
    %18 = vrot.lane.b32.xlu0 %v17, 96
    %v19 = vpop.permute.xlu0 %18
    %vm20 = vcmask 130048
    %s21 = scalar_lea.vmem [#allocation0], 2
    %22 = vst.msk [vmem:[%s21] ss:$8 sm:$0xf] %vm20, %v19
    %v23 = vld [vmem:[#allocation2] sm:$0xf]
    %24 = vrot.lane.b32.xlu0 %v23, 80
    %v25 = vpop.permute.xlu0 %24
    %vm26 = vcmask 130048
    %s27 = scalar_lea.vmem [#allocation0], 3
    %28 = vst.msk [vmem:[%s27] ss:$8 sm:$0xf] %vm26, %v25
    %v29 = vld [vmem:[#allocation2] sm:$0xf]
    %30 = vrot.lane.b32.xlu0 %v29, 64
    %v31 = vpop.permute.xlu0 %30
    %vm32 = vcmask 130048
    %s33 = scalar_lea.vmem [#allocation0], 4
    %34 = vst.msk [vmem:[%s33] ss:$8 sm:$0xf] %vm32, %v31
    %v35 = vld [vmem:[#allocation2] sm:$0xf]
    %36 = vrot.lane.b32.xlu0 %v35, 48
    %v37 = vpop.permute.xlu0 %36
    %vm38 = vcmask 130048
    %s39 = scalar_lea.vmem [#allocation0], 5
    %40 = vst.msk [vmem:[%s39] ss:$8 sm:$0xf] %vm38, %v37
    %v41 = vld [vmem:[#allocation2] sm:$0xf]
    %42 = vrot.lane.b32.xlu0 %v41, 32
    %v43 = vpop.permute.xlu0 %42
    %vm44 = vcmask 130048
    %s45 = scalar_lea.vmem [#allocation0], 6
    %46 = vst.msk [vmem:[%s45] ss:$8 sm:$0xf] %vm44, %v43
    %v47 = vld [vmem:[#allocation2] sm:$0xf]
    %48 = vrot.lane.b32.xlu0 %v47, 16
    %v49 = vpop.permute.xlu0 %48
    %vm50 = vcmask 130048
    %s51 = scalar_lea.vmem [#allocation0], 7
    %52 = vst.msk [vmem:[%s51] ss:$8 sm:$0xf] %vm50, %v49
    %s54 = ssub.s32 512, 512
    %55 = vsyncadd [#allocation1], %s54
    %s57 = sshll.u32 [#allocation0], 4
    %s58 = int_to_ptr.vmem [resolvable:$true] %s57
    %60 = dma.vmem_to_hbm [thread:$0]  %s58, 512, %s1, [#allocation1]
    %61 = dma.done [#allocation1], 512
    %62 = vsyncpa [#allocation1], 1

// kernel: cppn_generate.15
$region0: #{cppn_generate.15}
  #allocation0 [shape = 'u32[]', space=smem, size = 0x4, offset = 0x4, fixed_abs, tag = 'smem constant byte address 0x4 - core index']
  #allocation1 [shape = 'u32[144,128]{1,0:T(1,128)}', space=vmem, size = 0x12000, scoped, tag = 'internal scratch']
  %s0 = inlined_call_operand.vmem [shape: f32[16,512], index: 0, kind: input, shape index: {}]
  %s1 = inlined_call_operand.vmem [shape: f32[16,1], index: 1, kind: input, shape index: {}]
  %s2 = inlined_call_operand.vmem [shape: f32[16,1], index: 2, kind: input, shape index: {}]
  %s3 = inlined_call_operand.vmem [shape: f32[16,16], index: 3, kind: input, shape index: {}]
  %s4 = inlined_call_operand.vmem [shape: f32[1,512], index: 4, kind: output, shape index: {}]
  %s5 = sld [smem:[#allocation0]]
  $region26: #{cppn_generate.15} parent=0
    _
  %s7 = ssub.s32 1, %s5
  %s8 = scalar_select 0, %s7, %s5
  // Predicated region
  $region2: #{cppn_generate.15} parent=0 // pred_check
    _
  $region3: #{cppn_generate.15} parent=0 // pred_check_branch
    %10 = sbr.rel (0) target = $region5
  $region4: #{cppn_generate.15} parent=0 // pred_region
    _
  $region5: #{cppn_generate.15} parent=0 // pred_fallthru
    _
  // Predicated region
  $region6: #{cppn_generate.15} parent=0 // pred_check
    _
  $region7: #{cppn_generate.15} parent=0 // pred_check_branch
    %12 = sbr.rel (0) target = $region9
  $region8: #{cppn_generate.15} parent=0 // pred_region
    _
  $region9: #{cppn_generate.15} parent=0 // pred_fallthru
    _
  // Predicated region
  $region10: #{cppn_generate.15} parent=0 // pred_check
    _
  $region11: #{cppn_generate.15} parent=0 // pred_check_branch
    %14 = sbr.rel (0) target = $region13
  $region12: #{cppn_generate.15} parent=0 // pred_region
    _
  $region13: #{cppn_generate.15} parent=0 // pred_fallthru
    _
  // Predicated region
  $region14: #{cppn_generate.15} parent=0 // pred_check
    _
  $region15: #{cppn_generate.15} parent=0 // pred_check_branch
    %16 = sbr.rel (0) target = $region17
  $region16: #{cppn_generate.15} parent=0 // pred_region
    _
  $region17: #{cppn_generate.15} parent=0 // pred_fallthru
    _
  %v17 = vld [vmem:[%s0] sm:$0xff]
  %v18 = vld [vmem:[%s0 + $0x8] sm:$0xff]
  %v19 = vld [vmem:[%s0 + $0x10] sm:$0xff]
  %v20 = vld [vmem:[%s0 + $0x18] sm:$0xff]
  %v21 = vld [vmem:[%s0 + $0x20] sm:$0xff]
  %v22 = vld [vmem:[%s0 + $0x28] sm:$0xff]
  %v23 = vld [vmem:[%s0 + $0x30] sm:$0xff]
  %v24 = vld [vmem:[%s0 + $0x38] sm:$0xff]
  %v25 = vld [vmem:[%s1] sm:$0xff]
  %v26 = vld [vmem:[%s1 + $0x8] sm:$0xff]
  %28 = vset.pattern.permute.xlu0 0
  %29 = vperm.xlu0 %28, %v25
  %v30 = vpop.permute.xlu0 %29
  %33 = vset.pattern.permute.xlu0 0
  %34 = vperm.xlu0 %33, %v26
  %v35 = vpop.permute.xlu0 %34
  %v37 = vmul.f32 %v17, %v30
  %v38 = vmul.f32 %v18, %v30
  %v39 = vmul.f32 %v19, %v30
  %v40 = vmul.f32 %v20, %v30
  %v41 = vmul.f32 %v21, %v35
  %v42 = vmul.f32 %v22, %v35
  %v43 = vmul.f32 %v23, %v35
  %v44 = vmul.f32 %v24, %v35
  %v45 = vld [vmem:[%s2] sm:$0xff]
  %v46 = vld [vmem:[%s2 + $0x8] sm:$0xff]
  %48 = vset.pattern.permute.xlu0 0
  %49 = vperm.xlu0 %48, %v45
  %v50 = vpop.permute.xlu0 %49
  %53 = vset.pattern.permute.xlu0 0
  %54 = vperm.xlu0 %53, %v46
  %v55 = vpop.permute.xlu0 %54
  %v57 = vadd.f32 %v37, %v50
  %v58 = vadd.f32 %v38, %v50
  %v59 = vadd.f32 %v39, %v50
  %v60 = vadd.f32 %v40, %v50
  %v61 = vadd.f32 %v41, %v55
  %v62 = vadd.f32 %v42, %v55
  %v63 = vadd.f32 %v43, %v55
  %v64 = vadd.f32 %v44, %v55
  %vm65 = vcmp.ge.f32.partialorder %v57, 0.0
  %vm66 = vcmp.ge.f32.partialorder %v58, 0.0
  %vm67 = vcmp.ge.f32.partialorder %v59, 0.0
  %vm68 = vcmp.ge.f32.partialorder %v60, 0.0
  %vm69 = vcmp.ge.f32.partialorder %v61, 0.0
  %vm70 = vcmp.ge.f32.partialorder %v62, 0.0
  %vm71 = vcmp.ge.f32.partialorder %v63, 0.0
  %vm72 = vcmp.ge.f32.partialorder %v64, 0.0
  %v73 = vmul.f32 %v57, 0.01
  %v74 = vmul.f32 %v58, 0.01
  %v75 = vmul.f32 %v59, 0.01
  %v76 = vmul.f32 %v60, 0.01
  %v77 = vmul.f32 %v61, 0.01
  %v78 = vmul.f32 %v62, 0.01
  %v79 = vmul.f32 %v63, 0.01
  %v80 = vmul.f32 %v64, 0.01
  %v81 = vsel %vm65, %v57, %v73
  %v82 = vsel %vm66, %v58, %v74
  %v83 = vsel %vm67, %v59, %v75
  %v84 = vsel %vm68, %v60, %v76
  %v85 = vsel %vm69, %v61, %v77
  %v86 = vsel %vm70, %v62, %v78
  %v87 = vsel %vm71, %v63, %v79
  %v88 = vsel %vm72, %v64, %v80
  %v89 = vld [vmem:[%s3] sm:$0xff]
  %v90 = vld [vmem:[%s3 + $0x8] sm:$0xff]
  %vm91 = vcmask 130048
  %v93 = vsel %vm91, %v89, 0
  %v96 = vsel %vm91, %v90, 0
  %98 = vmatprep.subr.mxu0 0.0
  %99 = vmatpush1.msra.mxu0 0.0
  %100 = vmatprep.subr.mxu0 0.0
  %101 = vmatpush1.msra.mxu0 0.0
  %102 = vmatprep.subr.mxu0 0.0
  %103 = vmatpush1.msra.mxu0 0.0
  %104 = vmatprep.subr.mxu0 0.0
  %105 = vmatpush1.msra.mxu0 0.0
  %106 = vmatprep.subr.mxu0 0.0
  %107 = vmatpush1.msra.mxu0 0.0
  %108 = vmatprep.subr.mxu0 0.0
  %109 = vmatpush1.msra.mxu0 0.0
  %110 = vmatprep.subr.mxu0 0.0
  %111 = vmatpush1.msra.mxu0 0.0
  %112 = vmatprep.subr.mxu0 0.0
  %113 = vmatpush1.msra.mxu0 0.0
  %114 = vmatprep.subr.mxu0 0.0
  %115 = vmatpush1.msra.mxu0 0.0
  %116 = vmatprep.subr.mxu0 0.0
  %117 = vmatpush1.msra.mxu0 0.0
  %118 = vmatprep.subr.mxu0 0.0
  %119 = vmatpush1.msra.mxu0 0.0
  %120 = vmatprep.subr.mxu0 0.0
  %121 = vmatpush1.msra.mxu0 0.0
  %122 = vmatprep.subr.mxu0 0.0
  %123 = vmatpush1.msra.mxu0 0.0
  %124 = vmatprep.subr.mxu0 0.0
  %125 = vmatpush1.msra.mxu0 0.0
  %126 = vmatprep.subr.mxu0 %v86
  %127 = vmatpush1.msra.mxu0 %v85
  %128 = vmatprep.subr.mxu0 %v82
  %129 = vmatpush1.msra.mxu0 %v81
  %130 = vmatprep.subr.mxu0 0.0
  %131 = vmatpush2.msra.mxu0 0.0
  %132 = vmatprep.subr.mxu0 0.0
  %133 = vmatpush2.msra.mxu0 0.0
  %134 = vmatprep.subr.mxu0 0.0
  %135 = vmatpush2.msra.mxu0 0.0
  %136 = vmatprep.subr.mxu0 0.0
  %137 = vmatpush2.msra.mxu0 0.0
  %138 = vmatprep.subr.mxu0 0.0
  %139 = vmatpush2.msra.mxu0 0.0
  %140 = vmatprep.subr.mxu0 0.0
  %141 = vmatpush2.msra.mxu0 0.0
  %142 = vmatprep.subr.mxu0 0.0
  %143 = vmatpush2.msra.mxu0 0.0
  %144 = vmatprep.subr.mxu0 0.0
  %145 = vmatpush2.msra.mxu0 0.0
  %146 = vmatprep.subr.mxu0 0.0
  %147 = vmatpush2.msra.mxu0 0.0
  %148 = vmatprep.subr.mxu0 0.0
  %149 = vmatpush2.msra.mxu0 0.0
  %150 = vmatprep.subr.mxu0 0.0
  %151 = vmatpush2.msra.mxu0 0.0
  %152 = vmatprep.subr.mxu0 0.0
  %153 = vmatpush2.msra.mxu0 0.0
  %154 = vmatprep.subr.mxu0 0.0
  %155 = vmatpush2.msra.mxu0 0.0
  %156 = vmatprep.subr.mxu0 0.0
  %157 = vmatpush2.msra.mxu0 0.0
  %158 = vmatprep.subr.mxu0 0.0
  %159 = vmatpush2.msra.mxu0 0.0
  %160 = vmatprep.subr.mxu0 0.0
  %161 = vmatpush2.msra.mxu0 0.0
  %162 = vmatprep.mubr.f32.mxu0 0.0
  %163 = vmatmul.mubr.f32.gmra.mxu0 %v93
  %v164 = vpop.f32.mrf.mxu0
  %v165 = vadd.f32 0.0, %v164
  %v166 = vpop.f32.mrf.mxu0
  %v167 = vadd.f32 0.0, %v166
  %168 = vmatprep.mubr.f32.mxu0 0.0
  %169 = vmatmul.mubr.f32.gmra.mxu0 %v96
  %v170 = vpop.f32.mrf.mxu0
  %v171 = vpop.f32.mrf.mxu0
  %172 = vdwg.mxu0
  %173 = vmatprep.subr.mxu0 0.0
  %174 = vmatpush1.msra.mxu0 0.0
  %175 = vmatprep.subr.mxu0 0.0
  %176 = vmatpush1.msra.mxu0 0.0
  %177 = vmatprep.subr.mxu0 0.0
  %178 = vmatpush1.msra.mxu0 0.0
  %179 = vmatprep.subr.mxu0 0.0
  %180 = vmatpush1.msra.mxu0 0.0
  %181 = vmatprep.subr.mxu0 0.0
  %182 = vmatpush1.msra.mxu0 0.0
  %183 = vmatprep.subr.mxu0 0.0
  %184 = vmatpush1.msra.mxu0 0.0
  %185 = vmatprep.subr.mxu0 0.0
  %186 = vmatpush1.msra.mxu0 0.0
  %187 = vmatprep.subr.mxu0 0.0
  %188 = vmatpush1.msra.mxu0 0.0
  %189 = vmatprep.subr.mxu0 0.0
  %190 = vmatpush1.msra.mxu0 0.0
  %191 = vmatprep.subr.mxu0 0.0
  %192 = vmatpush1.msra.mxu0 0.0
  %193 = vmatprep.subr.mxu0 0.0
  %194 = vmatpush1.msra.mxu0 0.0
  %195 = vmatprep.subr.mxu0 0.0
  %196 = vmatpush1.msra.mxu0 0.0
  %197 = vmatprep.subr.mxu0 0.0
  %198 = vmatpush1.msra.mxu0 0.0
  %199 = vmatprep.subr.mxu0 0.0
  %200 = vmatpush1.msra.mxu0 0.0
  %201 = vmatprep.subr.mxu0 %v88
  %202 = vmatpush1.msra.mxu0 %v87
  %203 = vmatprep.subr.mxu0 %v84
  %204 = vmatpush1.msra.mxu0 %v83
  %205 = vmatprep.subr.mxu0 0.0
  %206 = vmatpush2.msra.mxu0 0.0
  %207 = vmatprep.subr.mxu0 0.0
  %208 = vmatpush2.msra.mxu0 0.0
  %209 = vmatprep.subr.mxu0 0.0
  %210 = vmatpush2.msra.mxu0 0.0
  %211 = vmatprep.subr.mxu0 0.0
  %212 = vmatpush2.msra.mxu0 0.0
  %213 = vmatprep.subr.mxu0 0.0
  %214 = vmatpush2.msra.mxu0 0.0
  %215 = vmatprep.subr.mxu0 0.0
  %216 = vmatpush2.msra.mxu0 0.0
  %217 = vmatprep.subr.mxu0 0.0
  %218 = vmatpush2.msra.mxu0 0.0
  %219 = vmatprep.subr.mxu0 0.0
  %220 = vmatpush2.msra.mxu0 0.0
  %221 = vmatprep.subr.mxu0 0.0
  %222 = vmatpush2.msra.mxu0 0.0
  %223 = vmatprep.subr.mxu0 0.0
  %224 = vmatpush2.msra.mxu0 0.0
  %225 = vmatprep.subr.mxu0 0.0
  %226 = vmatpush2.msra.mxu0 0.0
  %227 = vmatprep.subr.mxu0 0.0
  %228 = vmatpush2.msra.mxu0 0.0
  %229 = vmatprep.subr.mxu0 0.0
  %230 = vmatpush2.msra.mxu0 0.0
  %231 = vmatprep.subr.mxu0 0.0
  %232 = vmatpush2.msra.mxu0 0.0
  %233 = vmatprep.subr.mxu0 0.0
  %234 = vmatpush2.msra.mxu0 0.0
  %235 = vmatprep.subr.mxu0 0.0
  %236 = vmatpush2.msra.mxu0 0.0
  %237 = vmatprep.mubr.f32.mxu0 0.0
  %238 = vmatmul.mubr.f32.gmra.mxu0 %v93
  %v239 = vpop.f32.mrf.mxu0
  %v240 = vadd.f32 0.0, %v239
  %v241 = vpop.f32.mrf.mxu0
  %v242 = vadd.f32 0.0, %v241
  %243 = vmatprep.mubr.f32.mxu0 0.0
  %244 = vmatmul.mubr.f32.gmra.mxu0 %v96
  %v245 = vpop.f32.mrf.mxu0
  %v246 = vpop.f32.mrf.mxu0
  %247 = vdwg.mxu0
  %v248 = vtanh.pop %v165
  %v249 = vtanh.pop %v167
  %v250 = vtanh.pop %v240
  %v251 = vtanh.pop %v242
  %v256 = vcombine.low %v248, %v249
  %v257 = vcombine.low %v250, %v251
  %v259 = vunpack.c.l.s4 1966171168
  %v260 = vunpack.c.0.s8 %v259
  %v261 = vlaneseq
  %v262 = vshrl.u32 %v261, 7
  %v263 = vsub.s32 %v260, %v262
  %v264 = vrot.slane %v256, %v263
  %v266 = vunpack.c.l.s4 1966171168
  %v267 = vunpack.c.0.s8 %v266
  %v268 = vlaneseq
  %v269 = vshrl.u32 %v268, 7
  %v270 = vsub.s32 %v267, %v269
  %v271 = vrot.slane %v257, %v270
  %v272 = vcombine.low %v264, %v271
  %v274 = vunpack.c.l.s4 1966171168
  %v275 = vunpack.c.0.s8 %v274
  %v276 = vlaneseq
  %v277 = vshrl.u32 %v276, 7
  %v278 = vsub.s32 %v275, %v277
  %v279 = vrot.slane %v272, %v278
  %v281 = vlaneseq
  %vm282 = vcmp.ge.s32.totalorder %v281, 0
  %vm283 = vcmp.lt.s32.totalorder %v281, 512
  %vm284 = vmand %vm282, %vm283
  %285 = vst.msk [vmem:[%s4] sm:$0xf] %vm284, %v279
  // Predicated region
  $region18: #{cppn_generate.15} parent=0 // pred_check
    _
  $region19: #{cppn_generate.15} parent=0 // pred_check_branch
    %287 = sbr.rel (0) target = $region21
  $region20: #{cppn_generate.15} parent=0 // pred_region
    _
  $region21: #{cppn_generate.15} parent=0 // pred_fallthru
    _
  // Predicated region
  $region22: #{cppn_generate.15} parent=0 // pred_check
    _
  $region23: #{cppn_generate.15} parent=0 // pred_check_branch
    %289 = sbr.rel (0) target = $region25
  $region24: #{cppn_generate.15} parent=0 // pred_region
    _
  $region25: #{cppn_generate.15} parent=0 // pred_fallthru
    _

// kernel: cppn_generate.9
$region0: #{cppn_generate.9}
  #allocation0 [shape = 'u32[]', space=smem, size = 0x4, offset = 0x4, fixed_abs, tag = 'smem constant byte address 0x4 - core index']
  #allocation1 [shape = 'u32[144,128]{1,0:T(1,128)}', space=vmem, size = 0x12000, scoped, tag = 'internal scratch']
  #allocation2 [shape = 'f32[16,1]{1,0:T(8,128)}', space=vmem, size = 0x2000, scoped, tag = 'scratch operand']
  #allocation3 [shape = 'f32[16,1]{1,0:T(8,128)}', space=vmem, size = 0x2000, scoped, tag = 'scratch operand']
  %s0 = inlined_call_operand.vmem [shape: f32[16,512], index: 0, kind: input, shape index: {}]
  %s1 = inlined_call_operand.vmem [shape: f32[16,1], index: 1, kind: input, shape index: {}]
  %s2 = inlined_call_operand.vmem [shape: f32[16,1], index: 2, kind: input, shape index: {}]
  %s3 = inlined_call_operand.vmem [shape: f32[16,16], index: 3, kind: input, shape index: {}]
  %s4 = inlined_call_operand.vmem [shape: f32[16,512], index: 4, kind: output, shape index: {0}]
  %s5 = inlined_call_operand.vmem [shape: f32[16,1], index: 5, kind: output, shape index: {1}]
  %s6 = inlined_call_operand.vmem [shape: f32[16,1], index: 6, kind: output, shape index: {2}]
  %7 = xla_tuple %s4, %s5, %s6
  %s8 = sld [smem:[#allocation0]]
  $region50: #{cppn_generate.9} parent=0
    _
  %s10 = ssub.s32 1, %s8
  %s11 = scalar_select 0, %s10, %s8
  // Predicated region
  $region2: #{cppn_generate.9} parent=0 // pred_check
    _
  $region3: #{cppn_generate.9} parent=0 // pred_check_branch
    %13 = sbr.rel (0) target = $region5
  $region4: #{cppn_generate.9} parent=0 // pred_region
    _
  $region5: #{cppn_generate.9} parent=0 // pred_fallthru
    _
  // Predicated region
  $region6: #{cppn_generate.9} parent=0 // pred_check
    _
  $region7: #{cppn_generate.9} parent=0 // pred_check_branch
    %15 = sbr.rel (0) target = $region9
  $region8: #{cppn_generate.9} parent=0 // pred_region
    _
  $region9: #{cppn_generate.9} parent=0 // pred_fallthru
    _
  // Predicated region
  $region10: #{cppn_generate.9} parent=0 // pred_check
    _
  $region11: #{cppn_generate.9} parent=0 // pred_check_branch
    %17 = sbr.rel (0) target = $region13
  $region12: #{cppn_generate.9} parent=0 // pred_region
    _
  $region13: #{cppn_generate.9} parent=0 // pred_fallthru
    _
  // Predicated region
  $region14: #{cppn_generate.9} parent=0 // pred_check
    _
  $region15: #{cppn_generate.9} parent=0 // pred_check_branch
    %19 = sbr.rel (0) target = $region17
  $region16: #{cppn_generate.9} parent=0 // pred_region
    _
  $region17: #{cppn_generate.9} parent=0 // pred_fallthru
    _
  %v20 = vld [vmem:[%s0] sm:$0xff]
  %v21 = vld [vmem:[%s0 + $0x8] sm:$0xff]
  %v22 = vld [vmem:[%s0 + $0x10] sm:$0xff]
  %v23 = vld [vmem:[%s0 + $0x18] sm:$0xff]
  %v24 = vld [vmem:[%s0 + $0x20] sm:$0xff]
  %v25 = vld [vmem:[%s0 + $0x28] sm:$0xff]
  %v26 = vld [vmem:[%s0 + $0x30] sm:$0xff]
  %v27 = vld [vmem:[%s0 + $0x38] sm:$0xff]
  %v28 = vld [vmem:[%s1] sm:$0xff]
  %v29 = vld [vmem:[%s1 + $0x8] sm:$0xff]
  %31 = vset.pattern.permute.xlu0 0
  %32 = vperm.xlu0 %31, %v28
  %v33 = vpop.permute.xlu0 %32
  %36 = vset.pattern.permute.xlu0 0
  %37 = vperm.xlu0 %36, %v29
  %v38 = vpop.permute.xlu0 %37
  %v40 = vmul.f32 %v20, %v33
  %v41 = vmul.f32 %v21, %v33
  %v42 = vmul.f32 %v22, %v33
  %v43 = vmul.f32 %v23, %v33
  %v44 = vmul.f32 %v24, %v38
  %v45 = vmul.f32 %v25, %v38
  %v46 = vmul.f32 %v26, %v38
  %v47 = vmul.f32 %v27, %v38
  %v48 = vld [vmem:[%s2] sm:$0xff]
  %v49 = vld [vmem:[%s2 + $0x8] sm:$0xff]
  %51 = vset.pattern.permute.xlu0 0
  %52 = vperm.xlu0 %51, %v48
  %v53 = vpop.permute.xlu0 %52
  %56 = vset.pattern.permute.xlu0 0
  %57 = vperm.xlu0 %56, %v49
  %v58 = vpop.permute.xlu0 %57
  %v60 = vadd.f32 %v40, %v53
  %v61 = vadd.f32 %v41, %v53
  %v62 = vadd.f32 %v42, %v53
  %v63 = vadd.f32 %v43, %v53
  %v64 = vadd.f32 %v44, %v58
  %v65 = vadd.f32 %v45, %v58
  %v66 = vadd.f32 %v46, %v58
  %v67 = vadd.f32 %v47, %v58
  %vm68 = vcmp.ge.f32.partialorder %v60, 0.0
  %vm69 = vcmp.ge.f32.partialorder %v61, 0.0
  %vm70 = vcmp.ge.f32.partialorder %v62, 0.0
  %vm71 = vcmp.ge.f32.partialorder %v63, 0.0
  %vm72 = vcmp.ge.f32.partialorder %v64, 0.0
  %vm73 = vcmp.ge.f32.partialorder %v65, 0.0
  %vm74 = vcmp.ge.f32.partialorder %v66, 0.0
  %vm75 = vcmp.ge.f32.partialorder %v67, 0.0
  %v76 = vmul.f32 %v60, 0.01
  %v77 = vmul.f32 %v61, 0.01
  %v78 = vmul.f32 %v62, 0.01
  %v79 = vmul.f32 %v63, 0.01
  %v80 = vmul.f32 %v64, 0.01
  %v81 = vmul.f32 %v65, 0.01
  %v82 = vmul.f32 %v66, 0.01
  %v83 = vmul.f32 %v67, 0.01
  %v84 = vsel %vm68, %v60, %v76
  %v85 = vsel %vm69, %v61, %v77
  %v86 = vsel %vm70, %v62, %v78
  %v87 = vsel %vm71, %v63, %v79
  %v88 = vsel %vm72, %v64, %v80
  %v89 = vsel %vm73, %v65, %v81
  %v90 = vsel %vm74, %v66, %v82
  %v91 = vsel %vm75, %v67, %v83
  %v92 = vld [vmem:[%s3] sm:$0xff]
  %v93 = vld [vmem:[%s3 + $0x8] sm:$0xff]
  %vm94 = vcmask 130048
  %v96 = vsel %vm94, %v92, 0
  %v99 = vsel %vm94, %v93, 0
  %101 = vmatprep.subr.mxu0 0.0
  %102 = vmatpush1.msra.mxu0 0.0
  %103 = vmatprep.subr.mxu0 0.0
  %104 = vmatpush1.msra.mxu0 0.0
  %105 = vmatprep.subr.mxu0 0.0
  %106 = vmatpush1.msra.mxu0 0.0
  %107 = vmatprep.subr.mxu0 0.0
  %108 = vmatpush1.msra.mxu0 0.0
  %109 = vmatprep.subr.mxu0 0.0
  %110 = vmatpush1.msra.mxu0 0.0
  %111 = vmatprep.subr.mxu0 0.0
  %112 = vmatpush1.msra.mxu0 0.0
  %113 = vmatprep.subr.mxu0 0.0
  %114 = vmatpush1.msra.mxu0 0.0
  %115 = vmatprep.subr.mxu0 0.0
  %116 = vmatpush1.msra.mxu0 0.0
  %117 = vmatprep.subr.mxu0 0.0
  %118 = vmatpush1.msra.mxu0 0.0
  %119 = vmatprep.subr.mxu0 0.0
  %120 = vmatpush1.msra.mxu0 0.0
  %121 = vmatprep.subr.mxu0 0.0
  %122 = vmatpush1.msra.mxu0 0.0
  %123 = vmatprep.subr.mxu0 0.0
  %124 = vmatpush1.msra.mxu0 0.0
  %125 = vmatprep.subr.mxu0 0.0
  %126 = vmatpush1.msra.mxu0 0.0
  %127 = vmatprep.subr.mxu0 0.0
  %128 = vmatpush1.msra.mxu0 0.0
  %129 = vmatprep.subr.mxu0 %v89
  %130 = vmatpush1.msra.mxu0 %v88
  %131 = vmatprep.subr.mxu0 %v85
  %132 = vmatpush1.msra.mxu0 %v84
  %133 = vmatprep.subr.mxu0 0.0
  %134 = vmatpush2.msra.mxu0 0.0
  %135 = vmatprep.subr.mxu0 0.0
  %136 = vmatpush2.msra.mxu0 0.0
  %137 = vmatprep.subr.mxu0 0.0
  %138 = vmatpush2.msra.mxu0 0.0
  %139 = vmatprep.subr.mxu0 0.0
  %140 = vmatpush2.msra.mxu0 0.0
  %141 = vmatprep.subr.mxu0 0.0
  %142 = vmatpush2.msra.mxu0 0.0
  %143 = vmatprep.subr.mxu0 0.0
  %144 = vmatpush2.msra.mxu0 0.0
  %145 = vmatprep.subr.mxu0 0.0
  %146 = vmatpush2.msra.mxu0 0.0
  %147 = vmatprep.subr.mxu0 0.0
  %148 = vmatpush2.msra.mxu0 0.0
  %149 = vmatprep.subr.mxu0 0.0
  %150 = vmatpush2.msra.mxu0 0.0
  %151 = vmatprep.subr.mxu0 0.0
  %152 = vmatpush2.msra.mxu0 0.0
  %153 = vmatprep.subr.mxu0 0.0
  %154 = vmatpush2.msra.mxu0 0.0
  %155 = vmatprep.subr.mxu0 0.0
  %156 = vmatpush2.msra.mxu0 0.0
  %157 = vmatprep.subr.mxu0 0.0
  %158 = vmatpush2.msra.mxu0 0.0
  %159 = vmatprep.subr.mxu0 0.0
  %160 = vmatpush2.msra.mxu0 0.0
  %161 = vmatprep.subr.mxu0 0.0
  %162 = vmatpush2.msra.mxu0 0.0
  %163 = vmatprep.subr.mxu0 0.0
  %164 = vmatpush2.msra.mxu0 0.0
  %165 = vmatprep.mubr.f32.mxu0 0.0
  %166 = vmatmul.mubr.f32.gmra.mxu0 %v96
  %v167 = vpop.f32.mrf.mxu0
  %v168 = vadd.f32 0.0, %v167
  %v169 = vpop.f32.mrf.mxu0
  %v170 = vadd.f32 0.0, %v169
  %171 = vmatprep.mubr.f32.mxu0 0.0
  %172 = vmatmul.mubr.f32.gmra.mxu0 %v99
  %v173 = vpop.f32.mrf.mxu0
  %v174 = vadd.f32 0.0, %v173
  %v175 = vpop.f32.mrf.mxu0
  %v176 = vadd.f32 0.0, %v175
  %177 = vdwg.mxu0
  %178 = vmatprep.subr.mxu0 0.0
  %179 = vmatpush1.msra.mxu0 0.0
  %180 = vmatprep.subr.mxu0 0.0
  %181 = vmatpush1.msra.mxu0 0.0
  %182 = vmatprep.subr.mxu0 0.0
  %183 = vmatpush1.msra.mxu0 0.0
  %184 = vmatprep.subr.mxu0 0.0
  %185 = vmatpush1.msra.mxu0 0.0
  %186 = vmatprep.subr.mxu0 0.0
  %187 = vmatpush1.msra.mxu0 0.0
  %188 = vmatprep.subr.mxu0 0.0
  %189 = vmatpush1.msra.mxu0 0.0
  %190 = vmatprep.subr.mxu0 0.0
  %191 = vmatpush1.msra.mxu0 0.0
  %192 = vmatprep.subr.mxu0 0.0
  %193 = vmatpush1.msra.mxu0 0.0
  %194 = vmatprep.subr.mxu0 0.0
  %195 = vmatpush1.msra.mxu0 0.0
  %196 = vmatprep.subr.mxu0 0.0
  %197 = vmatpush1.msra.mxu0 0.0
  %198 = vmatprep.subr.mxu0 0.0
  %199 = vmatpush1.msra.mxu0 0.0
  %200 = vmatprep.subr.mxu0 0.0
  %201 = vmatpush1.msra.mxu0 0.0
  %202 = vmatprep.subr.mxu0 0.0
  %203 = vmatpush1.msra.mxu0 0.0
  %204 = vmatprep.subr.mxu0 0.0
  %205 = vmatpush1.msra.mxu0 0.0
  %206 = vmatprep.subr.mxu0 %v91
  %207 = vmatpush1.msra.mxu0 %v90
  %208 = vmatprep.subr.mxu0 %v87
  %209 = vmatpush1.msra.mxu0 %v86
  %210 = vmatprep.subr.mxu0 0.0
  %211 = vmatpush2.msra.mxu0 0.0
  %212 = vmatprep.subr.mxu0 0.0
  %213 = vmatpush2.msra.mxu0 0.0
  %214 = vmatprep.subr.mxu0 0.0
  %215 = vmatpush2.msra.mxu0 0.0
  %216 = vmatprep.subr.mxu0 0.0
  %217 = vmatpush2.msra.mxu0 0.0
  %218 = vmatprep.subr.mxu0 0.0
  %219 = vmatpush2.msra.mxu0 0.0
  %220 = vmatprep.subr.mxu0 0.0
  %221 = vmatpush2.msra.mxu0 0.0
  %222 = vmatprep.subr.mxu0 0.0
  %223 = vmatpush2.msra.mxu0 0.0
  %224 = vmatprep.subr.mxu0 0.0
  %225 = vmatpush2.msra.mxu0 0.0
  %226 = vmatprep.subr.mxu0 0.0
  %227 = vmatpush2.msra.mxu0 0.0
  %228 = vmatprep.subr.mxu0 0.0
  %229 = vmatpush2.msra.mxu0 0.0
  %230 = vmatprep.subr.mxu0 0.0
  %231 = vmatpush2.msra.mxu0 0.0
  %232 = vmatprep.subr.mxu0 0.0
  %233 = vmatpush2.msra.mxu0 0.0
  %234 = vmatprep.subr.mxu0 0.0
  %235 = vmatpush2.msra.mxu0 0.0
  %236 = vmatprep.subr.mxu0 0.0
  %237 = vmatpush2.msra.mxu0 0.0
  %238 = vmatprep.subr.mxu0 0.0
  %239 = vmatpush2.msra.mxu0 0.0
  %240 = vmatprep.subr.mxu0 0.0
  %241 = vmatpush2.msra.mxu0 0.0
  %242 = vmatprep.mubr.f32.mxu0 0.0
  %243 = vmatmul.mubr.f32.gmra.mxu0 %v96
  %v244 = vpop.f32.mrf.mxu0
  %v245 = vadd.f32 0.0, %v244
  %v246 = vpop.f32.mrf.mxu0
  %v247 = vadd.f32 0.0, %v246
  %248 = vmatprep.mubr.f32.mxu0 0.0
  %249 = vmatmul.mubr.f32.gmra.mxu0 %v99
  %v250 = vpop.f32.mrf.mxu0
  %v251 = vadd.f32 0.0, %v250
  %v252 = vpop.f32.mrf.mxu0
  %v253 = vadd.f32 0.0, %v252
  %254 = vdwg.mxu0
  %255 = vst [vmem:[%s4] sm:$0xff] %v168
  %256 = vst [vmem:[%s4 + $0x8] sm:$0xff] %v170
  %257 = vst [vmem:[%s4 + $0x10] sm:$0xff] %v245
  %258 = vst [vmem:[%s4 + $0x18] sm:$0xff] %v247
  %259 = vst [vmem:[%s4 + $0x20] sm:$0xff] %v174
  %260 = vst [vmem:[%s4 + $0x28] sm:$0xff] %v176
  %261 = vst [vmem:[%s4 + $0x30] sm:$0xff] %v251
  %262 = vst [vmem:[%s4 + $0x38] sm:$0xff] %v253
  %p263 = scmp.eq.s32.totalorder 0, 0
  // Predicated region
  $region18: #{cppn_generate.9} parent=0 // pred_check
    %p264 = pneg %p263
  $region19: #{cppn_generate.9} parent=0 // pred_check_branch
    %266 = sbr.rel (%p264) target = $region21
  $region20: #{cppn_generate.9} parent=0 // pred_region
    %vm267 = vcmask 7168
    %268 = vst.msk [vmem:[#allocation2] sm:$0xff] %vm267, 0.0
    %269 = vst.msk [vmem:[#allocation2 + $0x8] sm:$0xff] %vm267, 0.0
    %270 = vst.msk [vmem:[#allocation3] sm:$0xff] %vm267, 0.0
    %271 = vst.msk [vmem:[#allocation3 + $0x8] sm:$0xff] %vm267, 0.0
  $region21: #{cppn_generate.9} parent=0 // pred_fallthru
    _
  %v272 = vlaneseq
  %v273 = vand.u32 %v272, 127
  %v274 = vadd.s32 %v273, 128
  %v275 = vadd.s32 %v273, 256
  %v276 = vadd.s32 %v273, 384
  %s277 = smul.u32 0, 512
  %v278 = vstv %s277
  %v279 = vadd.s32 %v278, %v273
  %v280 = vadd.s32 %v278, %v274
  %v281 = vadd.s32 %v278, %v275
  %v282 = vadd.s32 %v278, %v276
  %vm283 = vcmp.lt.s32.totalorder %v279, 512
  %vm284 = vcmp.lt.s32.totalorder %v280, 512
  %vm285 = vcmp.lt.s32.totalorder %v281, 512
  %vm286 = vcmp.lt.s32.totalorder %v282, 512
  %v287 = vsel %vm283, 1, 0
  %v288 = vsel %vm284, 1, 0
  %v289 = vsel %vm285, 1, 0
  %v290 = vsel %vm286, 1, 0
  %vm291 = vcmp.eq.s32.totalorder %v287, 1
  %vm292 = vcmp.eq.s32.totalorder %v288, 1
  %vm293 = vcmp.eq.s32.totalorder %v289, 1
  %vm294 = vcmp.eq.s32.totalorder %v290, 1
  %v295 = vsel %vm291, %v168, 0.0
  %v296 = vsel %vm292, %v170, 0.0
  %v297 = vsel %vm293, %v245, 0.0
  %v298 = vsel %vm294, %v247, 0.0
  %v299 = vsel %vm291, %v174, 0.0
  %v300 = vsel %vm292, %v176, 0.0
  %v301 = vsel %vm293, %v251, 0.0
  %v302 = vsel %vm294, %v253, 0.0
  %v303 = vld [vmem:[#allocation2] sm:$0xff]
  %v304 = vld [vmem:[#allocation2 + $0x8] sm:$0xff]
  %v305 = vadd.f32 %v295, %v296
  %v306 = vadd.f32 %v305, %v297
  %v307 = vadd.f32 %v306, %v298
  %308 = vadd.xlane.f32.xlu0 %v307
  %v309 = vpop.xlane.xlu0 %308
  %v310 = vadd.f32 %v299, %v300
  %v311 = vadd.f32 %v310, %v301
  %v312 = vadd.f32 %v311, %v302
  %313 = vadd.xlane.f32.xlu0 %v312
  %v314 = vpop.xlane.xlu0 %313
  %v315 = vadd.f32 %v303, %v309
  %v316 = vadd.f32 %v304, %v314
  %vm317 = vcmask 7168
  %318 = vst.msk [vmem:[#allocation2] sm:$0xff] %vm317, %v315
  %319 = vst.msk [vmem:[#allocation2 + $0x8] sm:$0xff] %vm317, %v316
  %v320 = vld [vmem:[#allocation3] sm:$0xff]
  %v321 = vld [vmem:[#allocation3 + $0x8] sm:$0xff]
  %v322 = vmul.f32 %v295, %v295
  %v323 = vmul.f32 %v296, %v296
  %v324 = vmul.f32 %v297, %v297
  %v325 = vmul.f32 %v298, %v298
  %v326 = vmul.f32 %v299, %v299
  %v327 = vmul.f32 %v300, %v300
  %v328 = vmul.f32 %v301, %v301
  %v329 = vmul.f32 %v302, %v302
  %v330 = vadd.f32 %v322, %v323
  %v331 = vadd.f32 %v330, %v324
  %v332 = vadd.f32 %v331, %v325
  %333 = vadd.xlane.f32.xlu0 %v332
  %v334 = vpop.xlane.xlu0 %333
  %v335 = vadd.f32 %v326, %v327
  %v336 = vadd.f32 %v335, %v328
  %v337 = vadd.f32 %v336, %v329
  %338 = vadd.xlane.f32.xlu0 %v337
  %v339 = vpop.xlane.xlu0 %338
  %v340 = vadd.f32 %v320, %v334
  %v341 = vadd.f32 %v321, %v339
  %342 = vst.msk [vmem:[#allocation3] sm:$0xff] %vm317, %v340
  %343 = vst.msk [vmem:[#allocation3 + $0x8] sm:$0xff] %vm317, %v341
  // Predicated region
  $region22: #{cppn_generate.9} parent=0 // pred_check
    %p344 = pneg %p263
  $region23: #{cppn_generate.9} parent=0 // pred_check_branch
    %346 = sbr.rel (%p344) target = $region25
  $region24: #{cppn_generate.9} parent=0 // pred_region
    %v347 = vld [vmem:[#allocation2] sm:$0xff]
    %v348 = vld [vmem:[#allocation2 + $0x8] sm:$0xff]
    %v349 = vmul.f32 %v347, 0.001953125
    %v350 = vmul.f32 %v348, 0.001953125
    %v351 = vld [vmem:[#allocation3] sm:$0xff]
    %v352 = vld [vmem:[#allocation3 + $0x8] sm:$0xff]
    %v353 = vmul.f32 %v351, 0.001953125
    %v354 = vmul.f32 %v352, 0.001953125
    %v355 = vmul.f32 %v349, %v349
    %v356 = vmul.f32 %v350, %v350
    %v357 = vsub.f32 %v353, %v355
    %v358 = vsub.f32 %v354, %v356
    %v359 = vmax.f32 %v357, 0.0
    %v360 = vmax.f32 %v358, 0.0
    %v361 = vadd.f32 %v359, 1e-05
    %v362 = vadd.f32 %v360, 1e-05
    %v363 = vrsqrt.pop %v361
    %v364 = vrsqrt.pop %v362
    %365 = vst.msk [vmem:[%s5] sm:$0xff] %vm317, %v363
    %366 = vst.msk [vmem:[%s5 + $0x8] sm:$0xff] %vm317, %v364
    %v367 = vsub.f32 0.0, %v349
    %v368 = vsub.f32 0.0, %v350
    %v369 = vmul.f32 %v367, %v363
    %v370 = vmul.f32 %v368, %v364
    %371 = vst.msk [vmem:[%s6] sm:$0xff] %vm317, %v369
    %372 = vst.msk [vmem:[%s6 + $0x8] sm:$0xff] %vm317, %v370
  $region25: #{cppn_generate.9} parent=0 // pred_fallthru
    _
  // Predicated region
  $region26: #{cppn_generate.9} parent=0 // pred_check
    _
  $region27: #{cppn_generate.9} parent=0 // pred_check_branch
    %374 = sbr.rel (0) target = $region29
  $region28: #{cppn_generate.9} parent=0 // pred_region
    _
  $region29: #{cppn_generate.9} parent=0 // pred_fallthru
    _
  // Predicated region
  $region30: #{cppn_generate.9} parent=0 // pred_check
    _
  $region31: #{cppn_generate.9} parent=0 // pred_check_branch
    %376 = sbr.rel (0) target = $region33
  $region32: #{cppn_generate.9} parent=0 // pred_region
    _
  $region33: #{cppn_generate.9} parent=0 // pred_fallthru
    _
  // Predicated region
  $region34: #{cppn_generate.9} parent=0 // pred_check
    _
  $region35: #{cppn_generate.9} parent=0 // pred_check_branch
    %378 = sbr.rel (0) target = $region37
  $region36: #{cppn_generate.9} parent=0 // pred_region
    _
  $region37: #{cppn_generate.9} parent=0 // pred_fallthru
    _
  // Predicated region
  $region38: #{cppn_generate.9} parent=0 // pred_check
    _
  $region39: #{cppn_generate.9} parent=0 // pred_check_branch
    %380 = sbr.rel (0) target = $region41
  $region40: #{cppn_generate.9} parent=0 // pred_region
    _
  $region41: #{cppn_generate.9} parent=0 // pred_fallthru
    _
  // Predicated region
  $region42: #{cppn_generate.9} parent=0 // pred_check
    _
  $region43: #{cppn_generate.9} parent=0 // pred_check_branch
    %382 = sbr.rel (0) target = $region45
  $region44: #{cppn_generate.9} parent=0 // pred_region
    _
  $region45: #{cppn_generate.9} parent=0 // pred_fallthru
    _
  // Predicated region
  $region46: #{cppn_generate.9} parent=0 // pred_check
    _
  $region47: #{cppn_generate.9} parent=0 // pred_check_branch
    %384 = sbr.rel (0) target = $region49
  $region48: #{cppn_generate.9} parent=0 // pred_region
    _
  $region49: #{cppn_generate.9} parent=0 // pred_fallthru
    _

// kernel: cppn_generate.8
$region0: #{cppn_generate.8}
  #allocation0 [shape = 'u32[]', space=smem, size = 0x4, offset = 0x4, fixed_abs, tag = 'smem constant byte address 0x4 - core index']
  #allocation1 [shape = 'u32[144,128]{1,0:T(1,128)}', space=vmem, size = 0x12000, scoped, tag = 'internal scratch']
  #allocation2 [shape = 'f32[16,1]{1,0:T(8,128)}', space=vmem, size = 0x2000, scoped, tag = 'scratch operand']
  #allocation3 [shape = 'f32[16,1]{1,0:T(8,128)}', space=vmem, size = 0x2000, scoped, tag = 'scratch operand']
  %s0 = inlined_call_operand.vmem [shape: f32[3,512], index: 0, kind: input, shape index: {}]
  %s1 = inlined_call_operand.vmem [shape: f32[16,16], index: 1, kind: input, shape index: {}]
  %s2 = inlined_call_operand.vmem [shape: f32[16,512], index: 2, kind: output, shape index: {0}]
  %s3 = inlined_call_operand.vmem [shape: f32[16,1], index: 3, kind: output, shape index: {1}]
  %s4 = inlined_call_operand.vmem [shape: f32[16,1], index: 4, kind: output, shape index: {2}]
  %5 = xla_tuple %s2, %s3, %s4
  %s6 = sld [smem:[#allocation0]]
  $region42: #{cppn_generate.8} parent=0
    _
  %s8 = ssub.s32 1, %s6
  %s9 = scalar_select 0, %s8, %s6
  // Predicated region
  $region2: #{cppn_generate.8} parent=0 // pred_check
    _
  $region3: #{cppn_generate.8} parent=0 // pred_check_branch
    %11 = sbr.rel (0) target = $region5
  $region4: #{cppn_generate.8} parent=0 // pred_region
    _
  $region5: #{cppn_generate.8} parent=0 // pred_fallthru
    _
  // Predicated region
  $region6: #{cppn_generate.8} parent=0 // pred_check
    _
  $region7: #{cppn_generate.8} parent=0 // pred_check_branch
    %13 = sbr.rel (0) target = $region9
  $region8: #{cppn_generate.8} parent=0 // pred_region
    _
  $region9: #{cppn_generate.8} parent=0 // pred_fallthru
    _
  %v14 = vld [vmem:[%s1] sm:$0xff]
  %v15 = vld [vmem:[%s1 + $0x8] sm:$0xff]
  %v16 = vld [vmem:[%s0] ss:$4 sm:$0xf]
  %18 = vset.pattern.permute.xlu0 0
  %19 = vperm.xlu0 %18, %v14
  %v20 = vpop.permute.xlu0 %19
  %23 = vset.pattern.permute.xlu0 0
  %24 = vperm.xlu0 %23, %v15
  %v25 = vpop.permute.xlu0 %24
  %v28 = vlaneseq
  %v29 = vshrl.u32 %v28, 7
  %v30 = vsub.s32 0, %v29
  %v31 = vrot.slane %v16, %v30
  %v32 = vlaneseq
  %v33 = vshrl.u32 %v32, 7
  %v34 = vsub.s32 1, %v33
  %v35 = vrot.slane %v16, %v34
  %v36 = vlaneseq
  %v37 = vshrl.u32 %v36, 7
  %v38 = vsub.s32 2, %v37
  %v39 = vrot.slane %v16, %v38
  %v40 = vlaneseq
  %v41 = vshrl.u32 %v40, 7
  %v42 = vsub.s32 3, %v41
  %v43 = vrot.slane %v16, %v42
  %v48 = vmul.f32 %v20, %v31
  %v49 = vmul.f32 %v20, %v35
  %v50 = vmul.f32 %v20, %v39
  %v51 = vmul.f32 %v20, %v43
  %v52 = vmul.f32 %v25, %v31
  %v53 = vmul.f32 %v25, %v35
  %v54 = vmul.f32 %v25, %v39
  %v55 = vmul.f32 %v25, %v43
  %s56 = scalar_lea.vmem %s0, 1
  %v57 = vld [vmem:[%s56] ss:$4 sm:$0xf]
  %58 = vset.pattern.permute.xlu0 1
  %59 = vperm.xlu0 %58, %v14
  %v60 = vpop.permute.xlu0 %59
  %62 = vset.pattern.permute.xlu0 1
  %63 = vperm.xlu0 %62, %v15
  %v64 = vpop.permute.xlu0 %63
  %v67 = vlaneseq
  %v68 = vshrl.u32 %v67, 7
  %v69 = vsub.s32 0, %v68
  %v70 = vrot.slane %v57, %v69
  %v71 = vlaneseq
  %v72 = vshrl.u32 %v71, 7
  %v73 = vsub.s32 1, %v72
  %v74 = vrot.slane %v57, %v73
  %v75 = vlaneseq
  %v76 = vshrl.u32 %v75, 7
  %v77 = vsub.s32 2, %v76
  %v78 = vrot.slane %v57, %v77
  %v79 = vlaneseq
  %v80 = vshrl.u32 %v79, 7
  %v81 = vsub.s32 3, %v80
  %v82 = vrot.slane %v57, %v81
  %v87 = vmul.f32 %v60, %v70
  %v88 = vmul.f32 %v60, %v74
  %v89 = vmul.f32 %v60, %v78
  %v90 = vmul.f32 %v60, %v82
  %v91 = vmul.f32 %v64, %v70
  %v92 = vmul.f32 %v64, %v74
  %v93 = vmul.f32 %v64, %v78
  %v94 = vmul.f32 %v64, %v82
  %v95 = vadd.f32 %v48, %v87
  %v96 = vadd.f32 %v49, %v88
  %v97 = vadd.f32 %v50, %v89
  %v98 = vadd.f32 %v51, %v90
  %v99 = vadd.f32 %v52, %v91
  %v100 = vadd.f32 %v53, %v92
  %v101 = vadd.f32 %v54, %v93
  %v102 = vadd.f32 %v55, %v94
  %s103 = scalar_lea.vmem %s0, 2
  %v104 = vld [vmem:[%s103] ss:$4 sm:$0xf]
  %105 = vset.pattern.permute.xlu0 2
  %106 = vperm.xlu0 %105, %v14
  %v107 = vpop.permute.xlu0 %106
  %109 = vset.pattern.permute.xlu0 2
  %110 = vperm.xlu0 %109, %v15
  %v111 = vpop.permute.xlu0 %110
  %v114 = vlaneseq
  %v115 = vshrl.u32 %v114, 7
  %v116 = vsub.s32 0, %v115
  %v117 = vrot.slane %v104, %v116
  %v118 = vlaneseq
  %v119 = vshrl.u32 %v118, 7
  %v120 = vsub.s32 1, %v119
  %v121 = vrot.slane %v104, %v120
  %v122 = vlaneseq
  %v123 = vshrl.u32 %v122, 7
  %v124 = vsub.s32 2, %v123
  %v125 = vrot.slane %v104, %v124
  %v126 = vlaneseq
  %v127 = vshrl.u32 %v126, 7
  %v128 = vsub.s32 3, %v127
  %v129 = vrot.slane %v104, %v128
  %v134 = vmul.f32 %v107, %v117
  %v135 = vmul.f32 %v107, %v121
  %v136 = vmul.f32 %v107, %v125
  %v137 = vmul.f32 %v107, %v129
  %v138 = vmul.f32 %v111, %v117
  %v139 = vmul.f32 %v111, %v121
  %v140 = vmul.f32 %v111, %v125
  %v141 = vmul.f32 %v111, %v129
  %v142 = vadd.f32 %v95, %v134
  %v143 = vadd.f32 %v96, %v135
  %v144 = vadd.f32 %v97, %v136
  %v145 = vadd.f32 %v98, %v137
  %v146 = vadd.f32 %v99, %v138
  %v147 = vadd.f32 %v100, %v139
  %v148 = vadd.f32 %v101, %v140
  %v149 = vadd.f32 %v102, %v141
  %150 = vst [vmem:[%s2] sm:$0xff] %v142
  %151 = vst [vmem:[%s2 + $0x8] sm:$0xff] %v143
  %152 = vst [vmem:[%s2 + $0x10] sm:$0xff] %v144
  %153 = vst [vmem:[%s2 + $0x18] sm:$0xff] %v145
  %154 = vst [vmem:[%s2 + $0x20] sm:$0xff] %v146
  %155 = vst [vmem:[%s2 + $0x28] sm:$0xff] %v147
  %156 = vst [vmem:[%s2 + $0x30] sm:$0xff] %v148
  %157 = vst [vmem:[%s2 + $0x38] sm:$0xff] %v149
  %p158 = scmp.eq.s32.totalorder 0, 0
  // Predicated region
  $region10: #{cppn_generate.8} parent=0 // pred_check
    %p159 = pneg %p158
  $region11: #{cppn_generate.8} parent=0 // pred_check_branch
    %161 = sbr.rel (%p159) target = $region13
  $region12: #{cppn_generate.8} parent=0 // pred_region
    %vm162 = vcmask 7168
    %163 = vst.msk [vmem:[#allocation2] sm:$0xff] %vm162, 0.0
    %164 = vst.msk [vmem:[#allocation2 + $0x8] sm:$0xff] %vm162, 0.0
    %165 = vst.msk [vmem:[#allocation3] sm:$0xff] %vm162, 0.0
    %166 = vst.msk [vmem:[#allocation3 + $0x8] sm:$0xff] %vm162, 0.0
  $region13: #{cppn_generate.8} parent=0 // pred_fallthru
    _
  %v167 = vlaneseq
  %v168 = vand.u32 %v167, 127
  %v169 = vadd.s32 %v168, 128
  %v170 = vadd.s32 %v168, 256
  %v171 = vadd.s32 %v168, 384
  %s172 = smul.u32 0, 512
  %v173 = vstv %s172
  %v174 = vadd.s32 %v173, %v168
  %v175 = vadd.s32 %v173, %v169
  %v176 = vadd.s32 %v173, %v170
  %v177 = vadd.s32 %v173, %v171
  %vm178 = vcmp.lt.s32.totalorder %v174, 512
  %vm179 = vcmp.lt.s32.totalorder %v175, 512
  %vm180 = vcmp.lt.s32.totalorder %v176, 512
  %vm181 = vcmp.lt.s32.totalorder %v177, 512
  %v182 = vsel %vm178, 1, 0
  %v183 = vsel %vm179, 1, 0
  %v184 = vsel %vm180, 1, 0
  %v185 = vsel %vm181, 1, 0
  %vm186 = vcmp.eq.s32.totalorder %v182, 1
  %vm187 = vcmp.eq.s32.totalorder %v183, 1
  %vm188 = vcmp.eq.s32.totalorder %v184, 1
  %vm189 = vcmp.eq.s32.totalorder %v185, 1
  %v190 = vsel %vm186, %v142, 0.0
  %v191 = vsel %vm187, %v143, 0.0
  %v192 = vsel %vm188, %v144, 0.0
  %v193 = vsel %vm189, %v145, 0.0
  %v194 = vsel %vm186, %v146, 0.0
  %v195 = vsel %vm187, %v147, 0.0
  %v196 = vsel %vm188, %v148, 0.0
  %v197 = vsel %vm189, %v149, 0.0
  %v198 = vld [vmem:[#allocation2] sm:$0xff]
  %v199 = vld [vmem:[#allocation2 + $0x8] sm:$0xff]
  %v200 = vadd.f32 %v190, %v191
  %v201 = vadd.f32 %v200, %v192
  %v202 = vadd.f32 %v201, %v193
  %203 = vadd.xlane.f32.xlu0 %v202
  %v204 = vpop.xlane.xlu0 %203
  %v205 = vadd.f32 %v194, %v195
  %v206 = vadd.f32 %v205, %v196
  %v207 = vadd.f32 %v206, %v197
  %208 = vadd.xlane.f32.xlu0 %v207
  %v209 = vpop.xlane.xlu0 %208
  %v210 = vadd.f32 %v198, %v204
  %v211 = vadd.f32 %v199, %v209
  %vm212 = vcmask 7168
  %213 = vst.msk [vmem:[#allocation2] sm:$0xff] %vm212, %v210
  %214 = vst.msk [vmem:[#allocation2 + $0x8] sm:$0xff] %vm212, %v211
  %v215 = vld [vmem:[#allocation3] sm:$0xff]
  %v216 = vld [vmem:[#allocation3 + $0x8] sm:$0xff]
  %v217 = vmul.f32 %v190, %v190
  %v218 = vmul.f32 %v191, %v191
  %v219 = vmul.f32 %v192, %v192
  %v220 = vmul.f32 %v193, %v193
  %v221 = vmul.f32 %v194, %v194
  %v222 = vmul.f32 %v195, %v195
  %v223 = vmul.f32 %v196, %v196
  %v224 = vmul.f32 %v197, %v197
  %v225 = vadd.f32 %v217, %v218
  %v226 = vadd.f32 %v225, %v219
  %v227 = vadd.f32 %v226, %v220
  %228 = vadd.xlane.f32.xlu0 %v227
  %v229 = vpop.xlane.xlu0 %228
  %v230 = vadd.f32 %v221, %v222
  %v231 = vadd.f32 %v230, %v223
  %v232 = vadd.f32 %v231, %v224
  %233 = vadd.xlane.f32.xlu0 %v232
  %v234 = vpop.xlane.xlu0 %233
  %v235 = vadd.f32 %v215, %v229
  %v236 = vadd.f32 %v216, %v234
  %237 = vst.msk [vmem:[#allocation3] sm:$0xff] %vm212, %v235
  %238 = vst.msk [vmem:[#allocation3 + $0x8] sm:$0xff] %vm212, %v236
  // Predicated region
  $region14: #{cppn_generate.8} parent=0 // pred_check
    %p239 = pneg %p158
  $region15: #{cppn_generate.8} parent=0 // pred_check_branch
    %241 = sbr.rel (%p239) target = $region17
  $region16: #{cppn_generate.8} parent=0 // pred_region
    %v242 = vld [vmem:[#allocation2] sm:$0xff]
    %v243 = vld [vmem:[#allocation2 + $0x8] sm:$0xff]
    %v244 = vmul.f32 %v242, 0.001953125
    %v245 = vmul.f32 %v243, 0.001953125
    %v246 = vld [vmem:[#allocation3] sm:$0xff]
    %v247 = vld [vmem:[#allocation3 + $0x8] sm:$0xff]
    %v248 = vmul.f32 %v246, 0.001953125
    %v249 = vmul.f32 %v247, 0.001953125
    %v250 = vmul.f32 %v244, %v244
    %v251 = vmul.f32 %v245, %v245
    %v252 = vsub.f32 %v248, %v250
    %v253 = vsub.f32 %v249, %v251
    %v254 = vmax.f32 %v252, 0.0
    %v255 = vmax.f32 %v253, 0.0
    %v256 = vadd.f32 %v254, 1e-05
    %v257 = vadd.f32 %v255, 1e-05
    %v258 = vrsqrt.pop %v256
    %v259 = vrsqrt.pop %v257
    %260 = vst.msk [vmem:[%s3] sm:$0xff] %vm212, %v258
    %261 = vst.msk [vmem:[%s3 + $0x8] sm:$0xff] %vm212, %v259
    %v262 = vsub.f32 0.0, %v244
    %v263 = vsub.f32 0.0, %v245
    %v264 = vmul.f32 %v262, %v258
    %v265 = vmul.f32 %v263, %v259
    %266 = vst.msk [vmem:[%s4] sm:$0xff] %vm212, %v264
    %267 = vst.msk [vmem:[%s4 + $0x8] sm:$0xff] %vm212, %v265
  $region17: #{cppn_generate.8} parent=0 // pred_fallthru
    _
  // Predicated region
  $region18: #{cppn_generate.8} parent=0 // pred_check
    _
  $region19: #{cppn_generate.8} parent=0 // pred_check_branch
    %269 = sbr.rel (0) target = $region21
  $region20: #{cppn_generate.8} parent=0 // pred_region
    _
  $region21: #{cppn_generate.8} parent=0 // pred_fallthru
    _
  // Predicated region
  $region22: #{cppn_generate.8} parent=0 // pred_check
    _
  $region23: #{cppn_generate.8} parent=0 // pred_check_branch
    %271 = sbr.rel (0) target = $region25
  $region24: #{cppn_generate.8} parent=0 // pred_region
    _
  $region25: #{cppn_generate.8} parent=0 // pred_fallthru
    _
  // Predicated region
  $region26: #{cppn_generate.8} parent=0 // pred_check
    _
  $region27: #{cppn_generate.8} parent=0 // pred_check_branch
    %273 = sbr.rel (0) target = $region29
  $region28: #{cppn_generate.8} parent=0 // pred_region
    _
  $region29: #{cppn_generate.8} parent=0 // pred_fallthru
    _
  // Predicated region
  $region30: #{cppn_generate.8} parent=0 // pred_check
    _
  $region31: #{cppn_generate.8} parent=0 // pred_check_branch
    %275 = sbr.rel (0) target = $region33
  $region32: #{cppn_generate.8} parent=0 // pred_region
    _
  $region33: #{cppn_generate.8} parent=0 // pred_fallthru
    _
  // Predicated region
  $region34: #{cppn_generate.8} parent=0 // pred_check
    _
  $region35: #{cppn_generate.8} parent=0 // pred_check_branch
    %277 = sbr.rel (0) target = $region37
  $region36: #{cppn_generate.8} parent=0 // pred_region
    _
  $region37: #{cppn_generate.8} parent=0 // pred_fallthru
    _
  // Predicated region
  $region38: #{cppn_generate.8} parent=0 // pred_check
    _
  $region39: #{cppn_generate.8} parent=0 // pred_check_branch
    %279 = sbr.rel (0) target = $region41
  $region40: #{cppn_generate.8} parent=0 // pred_region
    _
  $region41: #{cppn_generate.8} parent=0 // pred_fallthru
    _

</llo_original>
